<compile_context>
chip_gen: v6e
topology: v6e:2x2x1
jax: 0.10.0
libtpu: 0.0.40
codegen_flags: <defaults>
</compile_context>

<pallas_src>
import functools
import math

import jax
import jax.numpy as jnp
from jax import lax
from jax.experimental import pallas as pl
from jax.experimental.pallas import tpu as pltpu

RMS_EPS = float(jnp.finfo(jnp.float32).eps)  # torch.nn.RMSNorm(eps=None) -> finfo(dtype).eps


# ----------------------------- filter construction (plain JAX glue) -----------------------------
def compute_dimensions(n: int):
    if n <= 2:
        raise ValueError("n must be greater than 2")
    T_prime = math.ceil(math.sqrt(n - 2)) ** 2 + 2
    sqrt_T_prime = math.ceil(math.sqrt(T_prime - 2))
    k_max = sqrt_T_prime
    return T_prime, sqrt_T_prime, k_max


def get_hankel(seq_len: int, use_hankel_L: bool = False):
    entries = jnp.arange(1, seq_len + 1, dtype=jnp.float32)
    i_plus_j = entries[:, None] + entries[None, :]
    if use_hankel_L:
        sgn = (-1.0) ** (i_plus_j - 2.0) + 1.0
        denom = (i_plus_j + 3.0) * (i_plus_j - 1.0) * (i_plus_j + 1.0)
        Z = sgn * (8.0 / denom)
    else:
        Z = 2.0 / (i_plus_j ** 3 - i_plus_j)
    return Z


def get_tensorized_spectral_filters(n: int, k: int, use_hankel_L: bool = False):
    # TODO(synk): eigendecomposition has no Pallas equivalent; done once at param-setup time.
    _, sqrt_T_prime, k_max = compute_dimensions(n)
    k = min(k, k_max)
    Z = get_hankel(sqrt_T_prime)
    sigma, phi = jnp.linalg.eigh(Z)
    phi_i = phi[:, -k:] * sigma[-k:] ** 0.25
    phi_j = phi_i  # use_hankel_L = False path
    return jnp.kron(phi_i, phi_j)  # (sqrt_T_prime^2, k^2)


# ----------------------------------------- Pallas kernel ----------------------------------------
def _spectral_layer_kernel(
    x_ref,
    wn_attn_ref, wn_mlp_ref,
    w_qkv_ref, b_qkv_ref,
    decay_ref,
    wo_ref, bo_ref,
    wgu_ref, bgu_ref,
    wd_ref, bd_ref,
    o_ref,
    *, compute_dtype,
):
    Bt, T, D = x_ref.shape
    kk = wo_ref.shape[0]
    hidden = wd_ref.shape[0]
    cd = compute_dtype

    # Flatten the batch block into rows so every dense matmul sees M = Bt*T rows.
    x = x_ref[...].reshape(Bt * T, D)                                   # (R, D) f32

    # ---- RMSNorm (attention branch), kept in f32 ----
    ms = jnp.mean(x * x, axis=-1, keepdims=True)
    xn = x * lax.rsqrt(ms + RMS_EPS) * wn_attn_ref[0][None, :]

    # ---- fused QKV projection: one wide (D, 3*kk) MXU matmul (weights already in cd) ----
    qkv = jnp.dot(xn.astype(cd), w_qkv_ref[...],
                  preferred_element_type=jnp.float32) + b_qkv_ref[0][None, :]
    Q = qkv[:, :kk].reshape(Bt, T, kk)
    K = qkv[:, kk:2 * kk].reshape(Bt, T, kk)
    V = qkv[:, 2 * kk:].reshape(Bt, T, kk)

    # Fold decay into K (decay indexes the key position s -> exact rewrite).
    K = K * decay_ref[0][None, :, None]

    # Causal scores, batched over the Bt block:
    #   Y[b,t,:] = sum_{s<=t} (Q[b,t] . (decay[s]*K[b,s])) * V[b,s,:]
    S = jnp.einsum("btk,bsk->bts", Q.astype(cd), K.astype(cd),
                   preferred_element_type=jnp.float32)                  # (Bt, T, T)
    t_idx = lax.broadcasted_iota(jnp.int32, (T, T), 0)
    s_idx = lax.broadcasted_iota(jnp.int32, (T, T), 1)
    A = jnp.where((t_idx >= s_idx)[None, :, :], S, 0.0)
    Y = jnp.einsum("bts,bsk->btk", A.astype(cd), V.astype(cd),
                   preferred_element_type=jnp.float32).reshape(Bt * T, kk)

    attn_out = jnp.dot(Y.astype(cd), wo_ref[...],
                       preferred_element_type=jnp.float32) + bo_ref[0][None, :]
    x1 = x + attn_out

    # ---- RMSNorm (MLP branch), f32 ----
    ms2 = jnp.mean(x1 * x1, axis=-1, keepdims=True)
    xn2 = x1 * lax.rsqrt(ms2 + RMS_EPS) * wn_mlp_ref[0][None, :]

    # ---- SwiGLU MLP with fused gate||up projection ----
    gu = jnp.dot(xn2.astype(cd), wgu_ref[...],
                 preferred_element_type=jnp.float32) + bgu_ref[0][None, :]
    gate = gu[:, :hidden]
    up = gu[:, hidden:]
    fuse = gate * jax.nn.sigmoid(gate) * up
    mlp_out = jnp.dot(fuse.astype(cd), wd_ref[...],
                      preferred_element_type=jnp.float32) + bd_ref[0][None, :]

    o_ref[...] = (x1 + mlp_out).reshape(Bt, T, D)


# ------------------------------------------ wrapper ---------------------------------------------
def _choose_batch_tile(B, T, target_rows=256):
    """Largest divisor of B with Bt*T <= target rows while keeping >=2 grid steps (megacore)."""
    if T % 8 != 0:
        return 1  # sublane-merge reshape inside the kernel wants T to be a sublane multiple
    best = 1
    for bt in range(1, B + 1):
        if B % bt != 0:
            continue
        if bt * T > max(target_rows, T):
            continue
        if B > 1 and B // bt < 2:
            continue  # keep both v7x TensorCores fed
        best = bt
    return best


def spectral_attention_layer(x, params, *, compute_dtype=jnp.float32, block_b=None):
    B, T, D = x.shape
    cd = compute_dtype

    # ---- host-side weight fusion (exact algebraic refactors, done once outside the kernel) ----
    w_q = params["wi"] @ params["qf"]          # (D, kk)
    w_k = params["wi"] @ params["kf"]          # (D, kk)
    b_q = params["bi"] @ params["qf"]          # (1, kk)
    b_k = params["bi"] @ params["kf"]          # (1, kk)
    # Heavy matmul operands are pre-cast to the compute dtype once on the host (no per-step
    # VPU converts; half-size VMEM/DMA in bf16).  Biases / norms / decay stay f32.
    w_qkv = jnp.concatenate([w_q, w_k, params["wv"]], axis=1).astype(cd)    # (D, 3*kk)
    b_qkv = jnp.concatenate([b_q, b_k, params["bv"]], axis=1)               # (1, 3*kk) f32
    w_gu = jnp.concatenate([params["wg"], params["wu"]], axis=1).astype(cd)  # (D, 2*hidden)
    b_gu = jnp.concatenate([params["bg"], params["bu"]], axis=1)             # (1, 2*hidden) f32
    wo = params["wo"].astype(cd)
    wd = params["wd"].astype(cd)

    fused = [
        params["wn_attn"], params["wn_mlp"],
        w_qkv, b_qkv,
        params["decay"],
        wo, params["bo"],
        w_gu, b_gu,
        wd, params["bd"],
    ]

    bt = block_b if block_b is not None else _choose_batch_tile(B, T)
    assert B % bt == 0

    def rep_spec(a):
        nd = a.ndim
        return pl.BlockSpec(a.shape, lambda b, _nd=nd: (0,) * _nd)  # whole array, resident every step

    kernel = functools.partial(_spectral_layer_kernel, compute_dtype=cd)

    return pl.pallas_call(
        kernel,
        out_shape=jax.ShapeDtypeStruct((B, T, D), jnp.float32),
        grid_spec=pltpu.PrefetchScalarGridSpec(
            num_scalar_prefetch=0,
            grid=(B // bt,),
            in_specs=[pl.BlockSpec((bt, T, D), lambda b: (b, 0, 0))] + [rep_spec(a) for a in fused],
            out_specs=pl.BlockSpec((bt, T, D), lambda b: (b, 0, 0)),
        ),
        compiler_params=pltpu.CompilerParams(
            dimension_semantics=("parallel",),
            vmem_limit_bytes=48 * 1024 * 1024,   # explicit: > 16/32 MiB defaults, < v7x 64 MiB physical
        ),
    )(x, *fused)


# -------------------------------- deterministic parameter init ----------------------------------
def init_params(key, seq_len, n_embd, k):
    filt = get_tensorized_spectral_filters(seq_len, k).astype(jnp.float32)  # (h, kk)
    h, kk = filt.shape
    hidden = 4 * n_embd
    keys = jax.random.split(key, 9)

    def linear(kw, fan_in, fan_out):
        bound = 1.0 / math.sqrt(fan_in)
        k1, k2 = jax.random.split(kw)
        W = jax.random.uniform(k1, (fan_in, fan_out), jnp.float32, -bound, bound)
        b = jax.random.uniform(k2, (1, fan_out), jnp.float32, -bound, bound)
        return W, b

    wi, bi = linear(keys[0], n_embd, h)
    wv, bv = linear(keys[1], n_embd, kk)
    wo, bo = linear(keys[2], kk, n_embd)
    wg, bg = linear(keys[3], n_embd, hidden)
    wu, bu = linear(keys[4], n_embd, hidden)
    wd, bd = linear(keys[5], hidden, n_embd)

    # Non-trivial decay / norm weights so the decay-fold and RMSNorm scaling are actually exercised
    # (torch inits these to ones; the forward semantics hold for any parameter values).
    decay = jax.random.uniform(keys[6], (1, seq_len), jnp.float32, 0.5, 1.5)
    wn_attn = 1.0 + 0.1 * jax.random.normal(keys[7], (1, n_embd), jnp.float32)
    wn_mlp = 1.0 + 0.1 * jax.random.normal(keys[8], (1, n_embd), jnp.float32)

    return dict(
        wn_attn=wn_attn, wn_mlp=wn_mlp,
        wi=wi, bi=bi, wv=wv, bv=bv, wo=wo, bo=bo,
        qf=filt, kf=filt,                               # both LearnableSpectralFilters are identical
        decay=decay,
        wg=wg, bg=bg, wu=wu, bu=bu, wd=wd, bd=bd,
    )


# --------------------------------- pure-JAX reference (torch semantics) -------------------------
def reference_forward(x, p):
    def rmsnorm(v, w):
        ms = jnp.mean(v * v, axis=-1, keepdims=True)
        return v * lax.rsqrt(ms + RMS_EPS) * w

    xn = rmsnorm(x, p["wn_attn"][0])
    x_proj = xn @ p["wi"] + p["bi"][0]
    Q = jnp.einsum("bth,hk->btk", x_proj, p["qf"])
    K = jnp.einsum("bth,hk->btk", x_proj, p["kf"])
    V = xn @ p["wv"] + p["bv"][0]
    Z = jnp.einsum("bsp,bsn->bspn", V, K) * p["decay"][0][None, :, None, None]
    H = jnp.cumsum(Z, axis=1)
    Y = jnp.einsum("btn,btpn->btp", Q, H)
    x1 = x + (Y @ p["wo"] + p["bo"][0])

    xn2 = rmsnorm(x1, p["wn_mlp"][0])
    gate = xn2 @ p["wg"] + p["bg"][0]
    up = xn2 @ p["wu"] + p["bu"][0]
    fuse = jax.nn.silu(gate) * up
    return x1 + (fuse @ p["wd"] + p["bd"][0])


if __name__ == "__main__":
    # B=8 so the batch-blocking path is exercised (Bt=4, grid=(2,) -> both v7x TCs get work).
    B, seq_len, n_embd, k_spec = 8, 16, 32, 4   # -> filters (16, 16), MLP hidden 128

    key = jax.random.PRNGKey(0)
    k_params, k_x = jax.random.split(key)
    params = init_params(k_params, seq_len, n_embd, k_spec)
    x = jax.random.normal(k_x, (B, seq_len, n_embd), dtype=jnp.float32)

    # f32 MXU path (matches torch semantics up to f32 rounding)
    out = spectral_attention_layer(x, params)
    jax.block_until_ready(out)

    ref = reference_forward(x, params)
    assert out.shape == (B, seq_len, n_embd)
    err = float(jnp.max(jnp.abs(out - ref)))
    assert jnp.allclose(out, ref, atol=1e-3, rtol=1e-3), err

    # bf16 MXU path (v6e/v7x): bf16 operands (pre-cast weights), f32 accumulation, f32 RMSNorm.
    out_bf16 = spectral_attention_layer(x, params, compute_dtype=jnp.bfloat16)
    jax.block_until_ready(out_bf16)
    rel = float(jnp.max(jnp.abs(out_bf16 - ref)) / (jnp.max(jnp.abs(ref)) + 1e-6))
    assert rel < 0.1, rel

    print("KERNEL_OK")
</pallas_src>

<mosaic_0001>
module attributes {stable_mosaic.version = 11 : i64} {
  func.func @_spectral_layer_kernel(%arg0: i32, %arg1: memref<4x16x32xf32, #tpu.memory_space<vmem>>, %arg2: memref<1x32xf32, #tpu.memory_space<vmem>>, %arg3: memref<1x32xf32, #tpu.memory_space<vmem>>, %arg4: memref<32x48xf32, #tpu.memory_space<vmem>>, %arg5: memref<1x48xf32, #tpu.memory_space<vmem>>, %arg6: memref<1x16xf32, #tpu.memory_space<vmem>>, %arg7: memref<16x32xf32, #tpu.memory_space<vmem>>, %arg8: memref<1x32xf32, #tpu.memory_space<vmem>>, %arg9: memref<32x256xf32, #tpu.memory_space<vmem>>, %arg10: memref<1x256xf32, #tpu.memory_space<vmem>>, %arg11: memref<128x32xf32, #tpu.memory_space<vmem>>, %arg12: memref<1x32xf32, #tpu.memory_space<vmem>>, %arg13: memref<4x16x32xf32, #tpu.memory_space<vmem>>) attributes {dimension_semantics = [#tpu.dimension_semantics<parallel>], iteration_bounds = array<i64: 2>, scalar_prefetch = 0 : i64, scratch_operands = 0 : i64, tpu.core_type = #tpu.core_type<tc>, window_params = [{transform_indices = @transform_0, window_bounds = array<i64: 4, 16, 32>}, {pipeline_mode = #tpu.pipeline_mode<synchronous>, transform_indices = @transform_1, window_bounds = array<i64: 1, 32>}, {pipeline_mode = #tpu.pipeline_mode<synchronous>, transform_indices = @transform_2, window_bounds = array<i64: 1, 32>}, {pipeline_mode = #tpu.pipeline_mode<synchronous>, transform_indices = @transform_3, window_bounds = array<i64: 32, 48>}, {pipeline_mode = #tpu.pipeline_mode<synchronous>, transform_indices = @transform_4, window_bounds = array<i64: 1, 48>}, {pipeline_mode = #tpu.pipeline_mode<synchronous>, transform_indices = @transform_5, window_bounds = array<i64: 1, 16>}, {pipeline_mode = #tpu.pipeline_mode<synchronous>, transform_indices = @transform_6, window_bounds = array<i64: 16, 32>}, {pipeline_mode = #tpu.pipeline_mode<synchronous>, transform_indices = @transform_7, window_bounds = array<i64: 1, 32>}, {pipeline_mode = #tpu.pipeline_mode<synchronous>, transform_indices = @transform_8, window_bounds = array<i64: 32, 256>}, {pipeline_mode = #tpu.pipeline_mode<synchronous>, transform_indices = @transform_9, window_bounds = array<i64: 1, 256>}, {pipeline_mode = #tpu.pipeline_mode<synchronous>, transform_indices = @transform_10, window_bounds = array<i64: 128, 32>}, {pipeline_mode = #tpu.pipeline_mode<synchronous>, transform_indices = @transform_11, window_bounds = array<i64: 1, 32>}, {transform_indices = @transform_12, window_bounds = array<i64: 4, 16, 32>}]} {
    %c0 = arith.constant 0 : index
    %c0_0 = arith.constant 0 : index
    %c0_1 = arith.constant 0 : index
    %0 = vector.load %arg1[%c0, %c0_0, %c0_1] : memref<4x16x32xf32, #tpu.memory_space<vmem>>, vector<4x16x32xf32>
    %1 = vector.shape_cast %0 : vector<4x16x32xf32> to vector<64x32xf32>
    %2 = arith.mulf %1, %1 : vector<64x32xf32>
    %cst = arith.constant dense<0.000000e+00> : vector<64xf32>
    %3 = vector.multi_reduction <add>, %2, %cst [1] : vector<64x32xf32> to vector<64xf32>
    %4 = vector.shape_cast %3 : vector<64xf32> to vector<64x1xf32>
    %cst_2 = arith.constant 3.200000e+01 : f32
    %5 = vector.broadcast %cst_2 : f32 to vector<64x1xf32>
    %6 = arith.divf %4, %5 : vector<64x1xf32>
    %cst_3 = arith.constant 1.1920929E-7 : f32
    %7 = vector.broadcast %cst_3 : f32 to vector<64x1xf32>
    %8 = arith.addf %6, %7 : vector<64x1xf32>
    %9 = math.rsqrt %8 : vector<64x1xf32>
    %10 = vector.broadcast %9 : vector<64x1xf32> to vector<64x32xf32>
    %11 = arith.mulf %1, %10 : vector<64x32xf32>
    %c0_4 = arith.constant 0 : index
    %c0_5 = arith.constant 0 : index
    %12 = vector.load %arg2[%c0_4, %c0_5] : memref<1x32xf32, #tpu.memory_space<vmem>>, vector<1x32xf32>
    %13 = vector.shape_cast %12 : vector<1x32xf32> to vector<32xf32>
    %14 = vector.shape_cast %13 : vector<32xf32> to vector<1x32xf32>
    %15 = vector.broadcast %14 : vector<1x32xf32> to vector<64x32xf32>
    %16 = arith.mulf %11, %15 : vector<64x32xf32>
    %c0_6 = arith.constant 0 : index
    %c0_7 = arith.constant 0 : index
    %17 = vector.load %arg4[%c0_6, %c0_7] : memref<32x48xf32, #tpu.memory_space<vmem>>, vector<32x48xf32>
    %cst_8 = arith.constant dense<0.000000e+00> : vector<64x48xf32>
    %18 = tpu.matmul %16, %17, %cst_8 {dimension_numbers = #tpu.dot_dimension_numbers<[1], [0], [0], [1], [0, 0, 1, 1], [], []>} : vector<64x32xf32>, vector<32x48xf32>, vector<64x48xf32> -> vector<64x48xf32>
    %c0_9 = arith.constant 0 : index
    %c0_10 = arith.constant 0 : index
    %19 = vector.load %arg5[%c0_9, %c0_10] : memref<1x48xf32, #tpu.memory_space<vmem>>, vector<1x48xf32>
    %20 = vector.shape_cast %19 : vector<1x48xf32> to vector<48xf32>
    %21 = vector.shape_cast %20 : vector<48xf32> to vector<1x48xf32>
    %22 = vector.broadcast %21 : vector<1x48xf32> to vector<64x48xf32>
    %23 = arith.addf %18, %22 : vector<64x48xf32>
    %24 = vector.extract_strided_slice %23 {offsets = [0, 0], sizes = [64, 16], strides = [1, 1]} : vector<64x48xf32> to vector<64x16xf32>
    %25 = vector.shape_cast %24 : vector<64x16xf32> to vector<4x16x16xf32>
    %26 = vector.extract_strided_slice %23 {offsets = [0, 16], sizes = [64, 16], strides = [1, 1]} : vector<64x48xf32> to vector<64x16xf32>
    %27 = vector.shape_cast %26 : vector<64x16xf32> to vector<4x16x16xf32>
    %28 = vector.extract_strided_slice %23 {offsets = [0, 32], sizes = [64, 16], strides = [1, 1]} : vector<64x48xf32> to vector<64x16xf32>
    %29 = vector.shape_cast %28 : vector<64x16xf32> to vector<4x16x16xf32>
    %c0_11 = arith.constant 0 : index
    %c0_12 = arith.constant 0 : index
    %30 = vector.load %arg6[%c0_11, %c0_12] : memref<1x16xf32, #tpu.memory_space<vmem>>, vector<1x16xf32>
    %31 = vector.shape_cast %30 : vector<1x16xf32> to vector<16xf32>
    %32 = vector.shape_cast %31 : vector<16xf32> to vector<1x16x1xf32>
    %33 = vector.broadcast %32 : vector<1x16x1xf32> to vector<4x16x16xf32>
    %34 = arith.mulf %27, %33 : vector<4x16x16xf32>
    "tpu.trace_start"() <{level = 10 : i32, message = "btk,bsk->bts"}> : () -> ()
    %cst_13 = arith.constant dense<0.000000e+00> : vector<4x16x16xf32>
    %35 = tpu.matmul %25, %34, %cst_13 {dimension_numbers = #tpu.dot_dimension_numbers<[2], [2], [1], [1], [0, 0, 0, 1, 1, 1], [0], [0]>} : vector<4x16x16xf32>, vector<4x16x16xf32>, vector<4x16x16xf32> -> vector<4x16x16xf32>
    "tpu.trace_stop"() : () -> ()
    %36 = tpu.iota {dimensions = array<i32: 0>} : vector<16x16xi32>
    %37 = tpu.iota {dimensions = array<i32: 1>} : vector<16x16xi32>
    %38 = arith.cmpi sge, %36, %37 : vector<16x16xi32>
    %39 = vector.shape_cast %38 : vector<16x16xi1> to vector<1x16x16xi1>
    %cst_14 = arith.constant 0.000000e+00 : f32
    %40 = vector.shape_cast %39 : vector<1x16x16xi1> to vector<1x16x16xi1>
    %41 = vector.broadcast %40 : vector<1x16x16xi1> to vector<4x16x16xi1>
    %42 = vector.broadcast %cst_14 : f32 to vector<4x16x16xf32>
    %43 = arith.select %41, %35, %42 : vector<4x16x16xi1>, vector<4x16x16xf32>
    "tpu.trace_start"() <{level = 10 : i32, message = "bts,bsk->btk"}> : () -> ()
    %cst_15 = arith.constant dense<0.000000e+00> : vector<4x16x16xf32>
    %44 = tpu.matmul %43, %29, %cst_15 {dimension_numbers = #tpu.dot_dimension_numbers<[2], [1], [1], [2], [0, 0, 0, 1, 1, 2], [0], [0]>} : vector<4x16x16xf32>, vector<4x16x16xf32>, vector<4x16x16xf32> -> vector<4x16x16xf32>
    "tpu.trace_stop"() : () -> ()
    %45 = vector.shape_cast %44 : vector<4x16x16xf32> to vector<64x16xf32>
    %c0_16 = arith.constant 0 : index
    %c0_17 = arith.constant 0 : index
    %46 = vector.load %arg7[%c0_16, %c0_17] : memref<16x32xf32, #tpu.memory_space<vmem>>, vector<16x32xf32>
    %cst_18 = arith.constant dense<0.000000e+00> : vector<64x32xf32>
    %47 = tpu.matmul %45, %46, %cst_18 {dimension_numbers = #tpu.dot_dimension_numbers<[1], [0], [0], [1], [0, 0, 1, 1], [], []>} : vector<64x16xf32>, vector<16x32xf32>, vector<64x32xf32> -> vector<64x32xf32>
    %c0_19 = arith.constant 0 : index
    %c0_20 = arith.constant 0 : index
    %48 = vector.load %arg8[%c0_19, %c0_20] : memref<1x32xf32, #tpu.memory_space<vmem>>, vector<1x32xf32>
    %49 = vector.shape_cast %48 : vector<1x32xf32> to vector<32xf32>
    %50 = vector.shape_cast %49 : vector<32xf32> to vector<1x32xf32>
    %51 = vector.broadcast %50 : vector<1x32xf32> to vector<64x32xf32>
    %52 = arith.addf %47, %51 : vector<64x32xf32>
    %53 = arith.addf %1, %52 : vector<64x32xf32>
    %54 = arith.mulf %53, %53 : vector<64x32xf32>
    %cst_21 = arith.constant dense<0.000000e+00> : vector<64xf32>
    %55 = vector.multi_reduction <add>, %54, %cst_21 [1] : vector<64x32xf32> to vector<64xf32>
    %56 = vector.shape_cast %55 : vector<64xf32> to vector<64x1xf32>
    %cst_22 = arith.constant 3.200000e+01 : f32
    %57 = vector.broadcast %cst_22 : f32 to vector<64x1xf32>
    %58 = arith.divf %56, %57 : vector<64x1xf32>
    %cst_23 = arith.constant 1.1920929E-7 : f32
    %59 = vector.broadcast %cst_23 : f32 to vector<64x1xf32>
    %60 = arith.addf %58, %59 : vector<64x1xf32>
    %61 = math.rsqrt %60 : vector<64x1xf32>
    %62 = vector.broadcast %61 : vector<64x1xf32> to vector<64x32xf32>
    %63 = arith.mulf %53, %62 : vector<64x32xf32>
    %c0_24 = arith.constant 0 : index
    %c0_25 = arith.constant 0 : index
    %64 = vector.load %arg3[%c0_24, %c0_25] : memref<1x32xf32, #tpu.memory_space<vmem>>, vector<1x32xf32>
    %65 = vector.shape_cast %64 : vector<1x32xf32> to vector<32xf32>
    %66 = vector.shape_cast %65 : vector<32xf32> to vector<1x32xf32>
    %67 = vector.broadcast %66 : vector<1x32xf32> to vector<64x32xf32>
    %68 = arith.mulf %63, %67 : vector<64x32xf32>
    %c0_26 = arith.constant 0 : index
    %c0_27 = arith.constant 0 : index
    %69 = vector.load %arg9[%c0_26, %c0_27] : memref<32x256xf32, #tpu.memory_space<vmem>>, vector<32x256xf32>
    %cst_28 = arith.constant dense<0.000000e+00> : vector<64x256xf32>
    %70 = tpu.matmul %68, %69, %cst_28 {dimension_numbers = #tpu.dot_dimension_numbers<[1], [0], [0], [1], [0, 0, 1, 1], [], []>} : vector<64x32xf32>, vector<32x256xf32>, vector<64x256xf32> -> vector<64x256xf32>
    %c0_29 = arith.constant 0 : index
    %c0_30 = arith.constant 0 : index
    %71 = vector.load %arg10[%c0_29, %c0_30] : memref<1x256xf32, #tpu.memory_space<vmem>>, vector<1x256xf32>
    %72 = vector.shape_cast %71 : vector<1x256xf32> to vector<256xf32>
    %73 = vector.shape_cast %72 : vector<256xf32> to vector<1x256xf32>
    %74 = vector.broadcast %73 : vector<1x256xf32> to vector<64x256xf32>
    %75 = arith.addf %70, %74 : vector<64x256xf32>
    %76 = vector.extract_strided_slice %75 {offsets = [0, 0], sizes = [64, 128], strides = [1, 1]} : vector<64x256xf32> to vector<64x128xf32>
    %77 = vector.extract_strided_slice %75 {offsets = [0, 128], sizes = [64, 128], strides = [1, 1]} : vector<64x256xf32> to vector<64x128xf32>
    %78 = arith.negf %76 : vector<64x128xf32>
    %79 = math.exp %78 : vector<64x128xf32>
    %cst_31 = arith.constant 1.000000e+00 : f32
    %80 = vector.broadcast %cst_31 : f32 to vector<64x128xf32>
    %81 = arith.addf %80, %79 : vector<64x128xf32>
    %82 = arith.divf %80, %81 : vector<64x128xf32>
    %83 = arith.mulf %76, %82 : vector<64x128xf32>
    %84 = arith.mulf %83, %77 : vector<64x128xf32>
    %c0_32 = arith.constant 0 : index
    %c0_33 = arith.constant 0 : index
    %85 = vector.load %arg11[%c0_32, %c0_33] : memref<128x32xf32, #tpu.memory_space<vmem>>, vector<128x32xf32>
    %cst_34 = arith.constant dense<0.000000e+00> : vector<64x32xf32>
    %86 = tpu.matmul %84, %85, %cst_34 {dimension_numbers = #tpu.dot_dimension_numbers<[1], [0], [0], [1], [0, 0, 1, 1], [], []>} : vector<64x128xf32>, vector<128x32xf32>, vector<64x32xf32> -> vector<64x32xf32>
    %c0_35 = arith.constant 0 : index
    %c0_36 = arith.constant 0 : index
    %87 = vector.load %arg12[%c0_35, %c0_36] : memref<1x32xf32, #tpu.memory_space<vmem>>, vector<1x32xf32>
    %88 = vector.shape_cast %87 : vector<1x32xf32> to vector<32xf32>
    %89 = vector.shape_cast %88 : vector<32xf32> to vector<1x32xf32>
    %90 = vector.broadcast %89 : vector<1x32xf32> to vector<64x32xf32>
    %91 = arith.addf %86, %90 : vector<64x32xf32>
    %92 = arith.addf %53, %91 : vector<64x32xf32>
    %93 = vector.shape_cast %92 : vector<64x32xf32> to vector<4x16x32xf32>
    %c0_37 = arith.constant 0 : index
    %c0_38 = arith.constant 0 : index
    %c0_39 = arith.constant 0 : index
    %94 = vector.load %arg13[%c0_37, %c0_38, %c0_39] : memref<4x16x32xf32, #tpu.memory_space<vmem>>, vector<4x16x32xf32>
    tpu.vector_store %arg13[%c0_37, %c0_38, %c0_39], %93 {strides = array<i32>} : memref<4x16x32xf32, #tpu.memory_space<vmem>>, vector<4x16x32xf32>,
    return
  }
  func.func @transform_0(%arg0: i32) -> (i32, i32, i32) {
    %c0_i32 = arith.constant 0 : i32
    %c0_i32_0 = arith.constant 0 : i32
    %c0_i32_1 = arith.constant 0 : i32
    return %arg0, %c0_i32, %c0_i32_0 : i32, i32, i32
  }
  func.func @transform_1(%arg0: i32) -> (i32, i32) {
    %c0_i32 = arith.constant 0 : i32
    %c0_i32_0 = arith.constant 0 : i32
    %c0_i32_1 = arith.constant 0 : i32
    return %c0_i32, %c0_i32_0 : i32, i32
  }
  func.func @transform_2(%arg0: i32) -> (i32, i32) {
    %c0_i32 = arith.constant 0 : i32
    %c0_i32_0 = arith.constant 0 : i32
    %c0_i32_1 = arith.constant 0 : i32
    return %c0_i32, %c0_i32_0 : i32, i32
  }
  func.func @transform_3(%arg0: i32) -> (i32, i32) {
    %c0_i32 = arith.constant 0 : i32
    %c0_i32_0 = arith.constant 0 : i32
    %c0_i32_1 = arith.constant 0 : i32
    return %c0_i32, %c0_i32_0 : i32, i32
  }
  func.func @transform_4(%arg0: i32) -> (i32, i32) {
    %c0_i32 = arith.constant 0 : i32
    %c0_i32_0 = arith.constant 0 : i32
    %c0_i32_1 = arith.constant 0 : i32
    return %c0_i32, %c0_i32_0 : i32, i32
  }
  func.func @transform_5(%arg0: i32) -> (i32, i32) {
    %c0_i32 = arith.constant 0 : i32
    %c0_i32_0 = arith.constant 0 : i32
    %c0_i32_1 = arith.constant 0 : i32
    return %c0_i32, %c0_i32_0 : i32, i32
  }
  func.func @transform_6(%arg0: i32) -> (i32, i32) {
    %c0_i32 = arith.constant 0 : i32
    %c0_i32_0 = arith.constant 0 : i32
    %c0_i32_1 = arith.constant 0 : i32
    return %c0_i32, %c0_i32_0 : i32, i32
  }
  func.func @transform_7(%arg0: i32) -> (i32, i32) {
    %c0_i32 = arith.constant 0 : i32
    %c0_i32_0 = arith.constant 0 : i32
    %c0_i32_1 = arith.constant 0 : i32
    return %c0_i32, %c0_i32_0 : i32, i32
  }
  func.func @transform_8(%arg0: i32) -> (i32, i32) {
    %c0_i32 = arith.constant 0 : i32
    %c0_i32_0 = arith.constant 0 : i32
    %c0_i32_1 = arith.constant 0 : i32
    return %c0_i32, %c0_i32_0 : i32, i32
  }
  func.func @transform_9(%arg0: i32) -> (i32, i32) {
    %c0_i32 = arith.constant 0 : i32
    %c0_i32_0 = arith.constant 0 : i32
    %c0_i32_1 = arith.constant 0 : i32
    return %c0_i32, %c0_i32_0 : i32, i32
  }
  func.func @transform_10(%arg0: i32) -> (i32, i32) {
    %c0_i32 = arith.constant 0 : i32
    %c0_i32_0 = arith.constant 0 : i32
    %c0_i32_1 = arith.constant 0 : i32
    return %c0_i32, %c0_i32_0 : i32, i32
  }
  func.func @transform_11(%arg0: i32) -> (i32, i32) {
    %c0_i32 = arith.constant 0 : i32
    %c0_i32_0 = arith.constant 0 : i32
    %c0_i32_1 = arith.constant 0 : i32
    return %c0_i32, %c0_i32_0 : i32, i32
  }
  func.func @transform_12(%arg0: i32) -> (i32, i32, i32) {
    %c0_i32 = arith.constant 0 : i32
    %c0_i32_0 = arith.constant 0 : i32
    %c0_i32_1 = arith.constant 0 : i32
    return %arg0, %c0_i32, %c0_i32_0 : i32, i32, i32
  }
}

</mosaic_0001>

<llo_original>
// kernel: tpu_custom_call.1
$region0: #{tpu_custom_call.1}
  #allocation0 [shape = 'u32[]', space=smem, size = 0x4, offset = 0x4, fixed_abs, tag = 'smem constant byte address 0x4 - core index']
  #allocation1 [shape = 'u32[144,128]{1,0:T(1,128)}', space=vmem, size = 0x12000, scoped, tag = 'internal scratch']
  %s0 = inlined_call_operand.vmem [shape: f32[8,16,32], index: 0, kind: input, shape index: {}]
  %s1 = inlined_call_operand.vmem [shape: f32[1,32], index: 1, kind: input, shape index: {}]
  %s2 = inlined_call_operand.hbm [shape: f32[1,32], index: 2, kind: input, shape index: {}]
  %s3 = inlined_call_operand.vmem [shape: f32[32,48], index: 3, kind: input, shape index: {}]
  %s4 = inlined_call_operand.vmem [shape: f32[1,48], index: 4, kind: input, shape index: {}]
  %s5 = inlined_call_operand.vmem [shape: f32[1,16], index: 5, kind: input, shape index: {}]
  %s6 = inlined_call_operand.hbm [shape: f32[16,32], index: 6, kind: input, shape index: {}]
  %s7 = inlined_call_operand.vmem [shape: f32[1,32], index: 7, kind: input, shape index: {}]
  %s8 = inlined_call_operand.hbm [shape: f32[32,256], index: 8, kind: input, shape index: {}]
  %s9 = inlined_call_operand.vmem [shape: f32[1,256], index: 9, kind: input, shape index: {}]
  %s10 = inlined_call_operand.vmem [shape: f32[128,32], index: 10, kind: input, shape index: {}]
  %s11 = inlined_call_operand.vmem [shape: f32[1,32], index: 11, kind: input, shape index: {}]
  %s12 = inlined_call_operand.hbm [shape: f32[8,16,32], index: 12, kind: output, shape index: {}]
  %s13 = sld [smem:[#allocation0]]
  $region93: #{tpu_custom_call.1} parent=0
    _
  %s15 = ssub.s32 1, %s13
  %s16 = scalar_select 0, %s15, %s13
  $region1: #{tpu_custom_call.1} parent=0
    #allocation2 [shape = 'u8[512]{0}', space=vmem, size = 0x400, scoped, tag = 'input window, operand 2, single buffered']
    #allocation3 [shape = 's32[2]{0}', space=sflag, size = 0x8, scoped, tag = 'scoped memory for tpu_custom_call.1']
    #allocation4 [shape = 's32[2]{0}', space=sflag, size = 0x8, scoped, tag = 'scoped memory for tpu_custom_call.1']
    #allocation5 [shape = 'u8[8192]{0}', space=vmem, size = 0x2000, scoped, tag = 'input window, operand 6, single buffered']
    #allocation6 [shape = 's32[1]{0}', space=sflag, size = 0x4, scoped, tag = 'scoped memory for tpu_custom_call.1']
    #allocation7 [shape = 'u8[32768]{0}', space=vmem, size = 0x8000, scoped, tag = 'input window, operand 8, single buffered']
    #allocation8 [shape = 'u8[65536]{0}', space=vmem, size = 0x10000, scoped, tag = 'output window, operand 0']
    %17 = vsyncpa [#allocation3], 0
    %18 = vsyncpa [#allocation6], 0
    %19 = vsyncpa [#allocation4], 0
    %s20 = scalar_lea.sflag [#allocation4], 1
    %21 = vsyncpa %s20, 0
    loop: start=0, step=1, limit=4
    $region2: #{tpu_custom_call.1} parent=1 // loop_pre_header
      _
    $region3: #{tpu_custom_call.1} parent=1 // loop_header
      %s23 = sphi 0, %s27
      %p24 = scmp.ge.s32.totalorder %s23, 4
      %s33 = sphi 0, %s35
      %s36 = sphi 0, %s33
      %s37 = sphi 0, %s36
      %s53 = sphi 0, %s37
      %s57 = sphi 0, %s57
      %s59 = sphi 0, %s57
      %s60 = sphi 0, %s59
      %s74 = sphi 0, %s60
      %s78 = sphi 0, %s78
      %s80 = sphi 0, %s78
      %s81 = sphi 0, %s80
      %s95 = sphi 0, %s81
      %s99 = sphi 0, %s99
      %s101 = sphi 0, %s99
      %s102 = sphi 0, %s101
      %s116 = sphi 0, %s102
      %s120 = sphi 0, %s120
      %s122 = sphi 0, %s120
      %s123 = sphi 0, %s122
      %s137 = sphi 0, %s123
      %s141 = sphi 0, %s141
      %s143 = sphi 0, %s141
      %s144 = sphi 0, %s143
      %s158 = sphi 0, %s144
      %s162 = sphi 0, %s162
      %s164 = sphi 0, %s162
      %s165 = sphi 0, %s164
      %s179 = sphi 0, %s165
      %s183 = sphi 0, %s183
      %s185 = sphi 0, %s183
      %s186 = sphi 0, %s185
      %s200 = sphi 0, %s186
      %s204 = sphi 0, %s204
      %s206 = sphi 0, %s204
      %s207 = sphi 0, %s206
      %s221 = sphi 0, %s207
      %s225 = sphi 0, %s225
      %s227 = sphi 0, %s225
      %s228 = sphi 0, %s227
      %s242 = sphi 0, %s228
      %s246 = sphi 0, %s246
      %s248 = sphi 0, %s246
      %s249 = sphi 0, %s248
      %s263 = sphi 0, %s249
      %s267 = sphi 0, %s267
      %s269 = sphi 0, %s267
      %s270 = sphi 0, %s269
      %s284 = sphi 0, %s270
      %s290 = sphi 0, %s292
      %s293 = sphi 0, %s290
      %s294 = sphi 0, %s293
      %s310 = sphi 0, %s294
    $region4: #{tpu_custom_call.1} parent=1 // loop_header_branch
      %26 = sbr.rel (%p24) target = $region8
    $region5: #{tpu_custom_call.1} parent=1 // loop_body
      %s28 = ssub.s32 %s23, 1
      %s29 = ssub.s32 %s23, 2
      %s30 = sadd.s32 %s23, 1
      %s31 = ssub.s32 %s23, %s30
      %p32 = scmp.eq.s32.totalorder %s31, 0
      %s34 = sadd.s32 %s33, 1
      %s35 = scalar_select %p32, %s33, %s34
      %p38 = pneg %p32
      %p39 = scmp.eq.s32.totalorder %s23, 1
      %p40 = por %p38, %p39
      %p41 = scmp.ne.s32.totalorder %s33, %s36
      %p42 = scmp.eq.s32.totalorder %s23, 0
      %p43 = por %p41, %p42
      %p44 = scmp.ne.s32.totalorder %s33, %s36
      %p45 = scmp.eq.s32.totalorder %s28, 1
      %p46 = por %p44, %p45
      %p47 = scmp.ne.s32.totalorder %s36, %s37
      %p48 = scmp.eq.s32.totalorder %s28, 0
      %p49 = por %p47, %p48
      %p50 = scmp.ne.s32.totalorder %s36, %s37
      %p51 = scmp.eq.s32.totalorder %s29, 1
      %p52 = por %p50, %p51
      %p54 = scmp.ne.s32.totalorder %s37, %s53
      %p55 = scmp.eq.s32.totalorder %s29, 0
      %p56 = por %p54, %p55
      %s58 = sadd.s32 %s57, 1
      %p61 = scmp.eq.s32.totalorder %s23, 1
      %p62 = scmp.ne.s32.totalorder %s57, %s59
      %p63 = scmp.eq.s32.totalorder %s23, 0
      %p64 = por %p62, %p63
      %p65 = scmp.ne.s32.totalorder %s57, %s59
      %p66 = scmp.eq.s32.totalorder %s28, 1
      %p67 = por %p65, %p66
      %p68 = scmp.ne.s32.totalorder %s59, %s60
      %p69 = scmp.eq.s32.totalorder %s28, 0
      %p70 = por %p68, %p69
      %p71 = scmp.ne.s32.totalorder %s59, %s60
      %p72 = scmp.eq.s32.totalorder %s29, 1
      %p73 = por %p71, %p72
      %p75 = scmp.ne.s32.totalorder %s60, %s74
      %p76 = scmp.eq.s32.totalorder %s29, 0
      %p77 = por %p75, %p76
      %s79 = sadd.s32 %s78, 1
      %p82 = scmp.eq.s32.totalorder %s23, 1
      %p83 = scmp.ne.s32.totalorder %s78, %s80
      %p84 = scmp.eq.s32.totalorder %s23, 0
      %p85 = por %p83, %p84
      %p86 = scmp.ne.s32.totalorder %s78, %s80
      %p87 = scmp.eq.s32.totalorder %s28, 1
      %p88 = por %p86, %p87
      %p89 = scmp.ne.s32.totalorder %s80, %s81
      %p90 = scmp.eq.s32.totalorder %s28, 0
      %p91 = por %p89, %p90
      %p92 = scmp.ne.s32.totalorder %s80, %s81
      %p93 = scmp.eq.s32.totalorder %s29, 1
      %p94 = por %p92, %p93
      %p96 = scmp.ne.s32.totalorder %s81, %s95
      %p97 = scmp.eq.s32.totalorder %s29, 0
      %p98 = por %p96, %p97
      %s100 = sadd.s32 %s99, 1
      %p103 = scmp.eq.s32.totalorder %s23, 1
      %p104 = scmp.ne.s32.totalorder %s99, %s101
      %p105 = scmp.eq.s32.totalorder %s23, 0
      %p106 = por %p104, %p105
      %p107 = scmp.ne.s32.totalorder %s99, %s101
      %p108 = scmp.eq.s32.totalorder %s28, 1
      %p109 = por %p107, %p108
      %p110 = scmp.ne.s32.totalorder %s101, %s102
      %p111 = scmp.eq.s32.totalorder %s28, 0
      %p112 = por %p110, %p111
      %p113 = scmp.ne.s32.totalorder %s101, %s102
      %p114 = scmp.eq.s32.totalorder %s29, 1
      %p115 = por %p113, %p114
      %p117 = scmp.ne.s32.totalorder %s102, %s116
      %p118 = scmp.eq.s32.totalorder %s29, 0
      %p119 = por %p117, %p118
      %s121 = sadd.s32 %s120, 1
      %p124 = scmp.eq.s32.totalorder %s23, 1
      %p125 = scmp.ne.s32.totalorder %s120, %s122
      %p126 = scmp.eq.s32.totalorder %s23, 0
      %p127 = por %p125, %p126
      %p128 = scmp.ne.s32.totalorder %s120, %s122
      %p129 = scmp.eq.s32.totalorder %s28, 1
      %p130 = por %p128, %p129
      %p131 = scmp.ne.s32.totalorder %s122, %s123
      %p132 = scmp.eq.s32.totalorder %s28, 0
      %p133 = por %p131, %p132
      %p134 = scmp.ne.s32.totalorder %s122, %s123
      %p135 = scmp.eq.s32.totalorder %s29, 1
      %p136 = por %p134, %p135
      %p138 = scmp.ne.s32.totalorder %s123, %s137
      %p139 = scmp.eq.s32.totalorder %s29, 0
      %p140 = por %p138, %p139
      %s142 = sadd.s32 %s141, 1
      %p145 = scmp.eq.s32.totalorder %s23, 1
      %p146 = scmp.ne.s32.totalorder %s141, %s143
      %p147 = scmp.eq.s32.totalorder %s23, 0
      %p148 = por %p146, %p147
      %p149 = scmp.ne.s32.totalorder %s141, %s143
      %p150 = scmp.eq.s32.totalorder %s28, 1
      %p151 = por %p149, %p150
      %p152 = scmp.ne.s32.totalorder %s143, %s144
      %p153 = scmp.eq.s32.totalorder %s28, 0
      %p154 = por %p152, %p153
      %p155 = scmp.ne.s32.totalorder %s143, %s144
      %p156 = scmp.eq.s32.totalorder %s29, 1
      %p157 = por %p155, %p156
      %p159 = scmp.ne.s32.totalorder %s144, %s158
      %p160 = scmp.eq.s32.totalorder %s29, 0
      %p161 = por %p159, %p160
      %s163 = sadd.s32 %s162, 1
      %p166 = scmp.eq.s32.totalorder %s23, 1
      %p167 = scmp.ne.s32.totalorder %s162, %s164
      %p168 = scmp.eq.s32.totalorder %s23, 0
      %p169 = por %p167, %p168
      %p170 = scmp.ne.s32.totalorder %s162, %s164
      %p171 = scmp.eq.s32.totalorder %s28, 1
      %p172 = por %p170, %p171
      %p173 = scmp.ne.s32.totalorder %s164, %s165
      %p174 = scmp.eq.s32.totalorder %s28, 0
      %p175 = por %p173, %p174
      %p176 = scmp.ne.s32.totalorder %s164, %s165
      %p177 = scmp.eq.s32.totalorder %s29, 1
      %p178 = por %p176, %p177
      %p180 = scmp.ne.s32.totalorder %s165, %s179
      %p181 = scmp.eq.s32.totalorder %s29, 0
      %p182 = por %p180, %p181
      %s184 = sadd.s32 %s183, 1
      %p187 = scmp.eq.s32.totalorder %s23, 1
      %p188 = scmp.ne.s32.totalorder %s183, %s185
      %p189 = scmp.eq.s32.totalorder %s23, 0
      %p190 = por %p188, %p189
      %p191 = scmp.ne.s32.totalorder %s183, %s185
      %p192 = scmp.eq.s32.totalorder %s28, 1
      %p193 = por %p191, %p192
      %p194 = scmp.ne.s32.totalorder %s185, %s186
      %p195 = scmp.eq.s32.totalorder %s28, 0
      %p196 = por %p194, %p195
      %p197 = scmp.ne.s32.totalorder %s185, %s186
      %p198 = scmp.eq.s32.totalorder %s29, 1
      %p199 = por %p197, %p198
      %p201 = scmp.ne.s32.totalorder %s186, %s200
      %p202 = scmp.eq.s32.totalorder %s29, 0
      %p203 = por %p201, %p202
      %s205 = sadd.s32 %s204, 1
      %p208 = scmp.eq.s32.totalorder %s23, 1
      %p209 = scmp.ne.s32.totalorder %s204, %s206
      %p210 = scmp.eq.s32.totalorder %s23, 0
      %p211 = por %p209, %p210
      %p212 = scmp.ne.s32.totalorder %s204, %s206
      %p213 = scmp.eq.s32.totalorder %s28, 1
      %p214 = por %p212, %p213
      %p215 = scmp.ne.s32.totalorder %s206, %s207
      %p216 = scmp.eq.s32.totalorder %s28, 0
      %p217 = por %p215, %p216
      %p218 = scmp.ne.s32.totalorder %s206, %s207
      %p219 = scmp.eq.s32.totalorder %s29, 1
      %p220 = por %p218, %p219
      %p222 = scmp.ne.s32.totalorder %s207, %s221
      %p223 = scmp.eq.s32.totalorder %s29, 0
      %p224 = por %p222, %p223
      %s226 = sadd.s32 %s225, 1
      %p229 = scmp.eq.s32.totalorder %s23, 1
      %p230 = scmp.ne.s32.totalorder %s225, %s227
      %p231 = scmp.eq.s32.totalorder %s23, 0
      %p232 = por %p230, %p231
      %p233 = scmp.ne.s32.totalorder %s225, %s227
      %p234 = scmp.eq.s32.totalorder %s28, 1
      %p235 = por %p233, %p234
      %p236 = scmp.ne.s32.totalorder %s227, %s228
      %p237 = scmp.eq.s32.totalorder %s28, 0
      %p238 = por %p236, %p237
      %p239 = scmp.ne.s32.totalorder %s227, %s228
      %p240 = scmp.eq.s32.totalorder %s29, 1
      %p241 = por %p239, %p240
      %p243 = scmp.ne.s32.totalorder %s228, %s242
      %p244 = scmp.eq.s32.totalorder %s29, 0
      %p245 = por %p243, %p244
      %s247 = sadd.s32 %s246, 1
      %p250 = scmp.eq.s32.totalorder %s23, 1
      %p251 = scmp.ne.s32.totalorder %s246, %s248
      %p252 = scmp.eq.s32.totalorder %s23, 0
      %p253 = por %p251, %p252
      %p254 = scmp.ne.s32.totalorder %s246, %s248
      %p255 = scmp.eq.s32.totalorder %s28, 1
      %p256 = por %p254, %p255
      %p257 = scmp.ne.s32.totalorder %s248, %s249
      %p258 = scmp.eq.s32.totalorder %s28, 0
      %p259 = por %p257, %p258
      %p260 = scmp.ne.s32.totalorder %s248, %s249
      %p261 = scmp.eq.s32.totalorder %s29, 1
      %p262 = por %p260, %p261
      %p264 = scmp.ne.s32.totalorder %s249, %s263
      %p265 = scmp.eq.s32.totalorder %s29, 0
      %p266 = por %p264, %p265
      %s268 = sadd.s32 %s267, 1
      %p271 = scmp.eq.s32.totalorder %s23, 1
      %p272 = scmp.ne.s32.totalorder %s267, %s269
      %p273 = scmp.eq.s32.totalorder %s23, 0
      %p274 = por %p272, %p273
      %p275 = scmp.ne.s32.totalorder %s267, %s269
      %p276 = scmp.eq.s32.totalorder %s28, 1
      %p277 = por %p275, %p276
      %p278 = scmp.ne.s32.totalorder %s269, %s270
      %p279 = scmp.eq.s32.totalorder %s28, 0
      %p280 = por %p278, %p279
      %p281 = scmp.ne.s32.totalorder %s269, %s270
      %p282 = scmp.eq.s32.totalorder %s29, 1
      %p283 = por %p281, %p282
      %p285 = scmp.ne.s32.totalorder %s270, %s284
      %p286 = scmp.eq.s32.totalorder %s29, 0
      %p287 = por %p285, %p286
      %s288 = ssub.s32 %s23, %s30
      %p289 = scmp.eq.s32.totalorder %s288, 0
      %s291 = sadd.s32 %s290, 1
      %s292 = scalar_select %p289, %s290, %s291
      %p295 = pneg %p289
      %p296 = scmp.eq.s32.totalorder %s23, 1
      %p297 = por %p295, %p296
      %p298 = scmp.ne.s32.totalorder %s290, %s293
      %p299 = scmp.eq.s32.totalorder %s23, 0
      %p300 = por %p298, %p299
      %p301 = scmp.ne.s32.totalorder %s290, %s293
      %p302 = scmp.eq.s32.totalorder %s28, 1
      %p303 = por %p301, %p302
      %p304 = scmp.ne.s32.totalorder %s293, %s294
      %p305 = scmp.eq.s32.totalorder %s28, 0
      %p306 = por %p304, %p305
      %p307 = scmp.ne.s32.totalorder %s293, %s294
      %p308 = scmp.eq.s32.totalorder %s29, 1
      %p309 = por %p307, %p308
      %p311 = scmp.ne.s32.totalorder %s294, %s310
      %p312 = scmp.eq.s32.totalorder %s29, 0
      %p313 = por %p311, %p312
      %p314 = scmp.le.s32.totalorder 1, %s23
      %p315 = scmp.lt.s32.totalorder %s23, 3
      %p316 = pnand %p314, %p315
      %p317 = pneg %p316
      // Predicated region
      $region9: #{tpu_custom_call.1} parent=5 // pred_check
        _
      $region10: #{tpu_custom_call.1} parent=5 // pred_check_branch
        %319 = sbr.rel (%p316) target = $region12
      $region11: #{tpu_custom_call.1} parent=5 // pred_region
        %s320 = ssub.s32 %s23, 1
        // Predicated region
        $region13: #{tpu_custom_call.1} parent=11 // pred_check
          %p321 = pneg %p70
        $region14: #{tpu_custom_call.1} parent=11 // pred_check_branch
          %323 = sbr.rel (%p321) target = $region16
        $region15: #{tpu_custom_call.1} parent=11 // pred_region
          _
        $region16: #{tpu_custom_call.1} parent=11 // pred_fallthru
          _
        // Predicated region
        $region17: #{tpu_custom_call.1} parent=11 // pred_check
          %p324 = pneg %p91
        $region18: #{tpu_custom_call.1} parent=11 // pred_check_branch
          %326 = sbr.rel (%p324) target = $region20
        $region19: #{tpu_custom_call.1} parent=11 // pred_region
          %s328 = ssub.s32 16, 16
          %329 = vsyncadd [#allocation3], %s328
          %s331 = sshll.u32 [#allocation2], 4
          %s332 = int_to_ptr.vmem [resolvable:$true] %s331
          %334 = dma.hbm_to_vmem [thread:$0]  %s2, 16, %s332, [#allocation3]
        $region20: #{tpu_custom_call.1} parent=11 // pred_fallthru
          _
        // Predicated region
        $region21: #{tpu_custom_call.1} parent=11 // pred_check
          %p335 = pneg %p112
        $region22: #{tpu_custom_call.1} parent=11 // pred_check_branch
          %337 = sbr.rel (%p335) target = $region24
        $region23: #{tpu_custom_call.1} parent=11 // pred_region
          _
        $region24: #{tpu_custom_call.1} parent=11 // pred_fallthru
          _
        // Predicated region
        $region25: #{tpu_custom_call.1} parent=11 // pred_check
          %p338 = pneg %p133
        $region26: #{tpu_custom_call.1} parent=11 // pred_check_branch
          %340 = sbr.rel (%p338) target = $region28
        $region27: #{tpu_custom_call.1} parent=11 // pred_region
          _
        $region28: #{tpu_custom_call.1} parent=11 // pred_fallthru
          _
        // Predicated region
        $region29: #{tpu_custom_call.1} parent=11 // pred_check
          %p341 = pneg %p154
        $region30: #{tpu_custom_call.1} parent=11 // pred_check_branch
          %343 = sbr.rel (%p341) target = $region32
        $region31: #{tpu_custom_call.1} parent=11 // pred_region
          _
        $region32: #{tpu_custom_call.1} parent=11 // pred_fallthru
          _
        // Predicated region
        $region33: #{tpu_custom_call.1} parent=11 // pred_check
          %p344 = pneg %p175
        $region34: #{tpu_custom_call.1} parent=11 // pred_check_branch
          %346 = sbr.rel (%p344) target = $region36
        $region35: #{tpu_custom_call.1} parent=11 // pred_region
          %s348 = ssub.s32 256, 256
          %349 = vsyncadd [#allocation6], %s348
          %s350 = sshll.u32 [#allocation5], 4
          %s351 = int_to_ptr.vmem [resolvable:$true] %s350
          %356 = dma.hbm_to_vmem [thread:$0]  %s6, 256, %s351, [#allocation6], 128, 128, 8
        $region36: #{tpu_custom_call.1} parent=11 // pred_fallthru
          _
        // Predicated region
        $region37: #{tpu_custom_call.1} parent=11 // pred_check
          %p357 = pneg %p196
        $region38: #{tpu_custom_call.1} parent=11 // pred_check_branch
          %359 = sbr.rel (%p357) target = $region40
        $region39: #{tpu_custom_call.1} parent=11 // pred_region
          _
        $region40: #{tpu_custom_call.1} parent=11 // pred_fallthru
          _
        // Predicated region
        $region41: #{tpu_custom_call.1} parent=11 // pred_check
          %p360 = pneg %p217
        $region42: #{tpu_custom_call.1} parent=11 // pred_check_branch
          %362 = sbr.rel (%p360) target = $region44
        $region43: #{tpu_custom_call.1} parent=11 // pred_region
          %s364 = ssub.s32 1024, 1024
          %365 = vsyncadd [#allocation6], %s364
          %s366 = sshll.u32 [#allocation7], 4
          %s367 = int_to_ptr.vmem [resolvable:$true] %s366
          %372 = dma.hbm_to_vmem [thread:$0]  %s8, 1024, %s367, [#allocation6], 256, 256, 16
        $region44: #{tpu_custom_call.1} parent=11 // pred_fallthru
          _
        // Predicated region
        $region45: #{tpu_custom_call.1} parent=11 // pred_check
          %p373 = pneg %p238
        $region46: #{tpu_custom_call.1} parent=11 // pred_check_branch
          %375 = sbr.rel (%p373) target = $region48
        $region47: #{tpu_custom_call.1} parent=11 // pred_region
          _
        $region48: #{tpu_custom_call.1} parent=11 // pred_fallthru
          _
        // Predicated region
        $region49: #{tpu_custom_call.1} parent=11 // pred_check
          %p376 = pneg %p259
        $region50: #{tpu_custom_call.1} parent=11 // pred_check_branch
          %378 = sbr.rel (%p376) target = $region52
        $region51: #{tpu_custom_call.1} parent=11 // pred_region
          _
        $region52: #{tpu_custom_call.1} parent=11 // pred_fallthru
          _
        // Predicated region
        $region53: #{tpu_custom_call.1} parent=11 // pred_check
          %p379 = pneg %p280
        $region54: #{tpu_custom_call.1} parent=11 // pred_check_branch
          %381 = sbr.rel (%p379) target = $region56
        $region55: #{tpu_custom_call.1} parent=11 // pred_region
          _
        $region56: #{tpu_custom_call.1} parent=11 // pred_fallthru
          _
      $region12: #{tpu_custom_call.1} parent=5 // pred_fallthru
        _
      %p382 = scmp.lt.s32.totalorder %s23, 2
      // Predicated region
      $region57: #{tpu_custom_call.1} parent=5 // pred_check
        %p383 = pneg %p382
      $region58: #{tpu_custom_call.1} parent=5 // pred_check_branch
        %385 = sbr.rel (%p383) target = $region60
      $region59: #{tpu_custom_call.1} parent=5 // pred_region
        // Predicated region
        $region61: #{tpu_custom_call.1} parent=59 // pred_check
          %p386 = pneg %p43
        $region62: #{tpu_custom_call.1} parent=59 // pred_check_branch
          %388 = sbr.rel (%p386) target = $region64
        $region63: #{tpu_custom_call.1} parent=59 // pred_region
          %s389 = smul.u32 4, %s23
          %p390 = scmp.lt.s32.totalorder %s389, 7
          %s391 = scalar_select %p390, %s389, 7
          %s392 = smul.addr %s391, 2
          %s393 = smul.addr %s392, 8
          %s394 = scalar_lea.vmem %s0, %s393
          %s395 = smul.u32 4, %s23
        $region64: #{tpu_custom_call.1} parent=59 // pred_fallthru
          _
      $region60: #{tpu_custom_call.1} parent=5 // pred_fallthru
        _
      %p396 = scmp.le.s32.totalorder 1, %s23
      %p397 = scmp.lt.s32.totalorder %s23, 3
      %p398 = pnand %p396, %p397
      %p399 = pneg %p398
      // Predicated region
      $region65: #{tpu_custom_call.1} parent=5 // pred_check
        _
      $region66: #{tpu_custom_call.1} parent=5 // pred_check_branch
        %401 = sbr.rel (%p398) target = $region68
      $region67: #{tpu_custom_call.1} parent=5 // pred_region
        %s402 = ssub.s32 %s23, 1
        // Predicated region
        $region69: #{tpu_custom_call.1} parent=67 // pred_check
          %p403 = pneg %p91
        $region70: #{tpu_custom_call.1} parent=67 // pred_check_branch
          %405 = sbr.rel (%p403) target = $region72
        $region71: #{tpu_custom_call.1} parent=67 // pred_region
          %406 = dma.done [#allocation3], 16
        $region72: #{tpu_custom_call.1} parent=67 // pred_fallthru
          _
        // Predicated region
        $region73: #{tpu_custom_call.1} parent=67 // pred_check
          %p407 = pneg %p175
        $region74: #{tpu_custom_call.1} parent=67 // pred_check_branch
          %409 = sbr.rel (%p407) target = $region76
        $region75: #{tpu_custom_call.1} parent=67 // pred_region
          %410 = dma.done [#allocation6], 256
        $region76: #{tpu_custom_call.1} parent=67 // pred_fallthru
          _
        // Predicated region
        $region77: #{tpu_custom_call.1} parent=67 // pred_check
          %p411 = pneg %p217
        $region78: #{tpu_custom_call.1} parent=67 // pred_check_branch
          %413 = sbr.rel (%p411) target = $region80
        $region79: #{tpu_custom_call.1} parent=67 // pred_region
          %414 = dma.done [#allocation6], 1024
        $region80: #{tpu_custom_call.1} parent=67 // pred_fallthru
          _
        %s415 = smul.u32 4, %s28
        %p416 = scmp.lt.s32.totalorder %s415, 7
        %s417 = scalar_select %p416, %s415, 7
        %s418 = smul.addr %s417, 2
        %s419 = smul.addr %s418, 8
        %s420 = scalar_lea.vmem %s0, %s419
        %p421 = pneg %p49
        %p422 = pneg %p46
        %p423 = pneg %p70
        %p424 = pneg %p67
        %p425 = pneg %p91
        %p426 = pneg %p88
        %p427 = pneg %p112
        %p428 = pneg %p109
        %p429 = pneg %p133
        %p430 = pneg %p130
        %p431 = pneg %p154
        %p432 = pneg %p151
        %p433 = pneg %p175
        %p434 = pneg %p172
        %p435 = pneg %p196
        %p436 = pneg %p193
        %p437 = pneg %p217
        %p438 = pneg %p214
        %p439 = pneg %p238
        %p440 = pneg %p235
        %p441 = pneg %p259
        %p442 = pneg %p256
        %p443 = pneg %p280
        %p444 = pneg %p277
        %p445 = pneg %p306
        %p446 = pneg %p303
        %s447 = sand.u32 %s293, 1
        %s448 = scalar_lea.sflag [#allocation4], %s447
        %s449 = sand.u32 %s293, 1
        %s450 = smul.addr %s449, 64
        %s451 = scalar_lea.vmem [#allocation8], %s450
        %s452 = smul.u32 4, %s28
        %p453 = scmp.lt.s32.totalorder %s452, 7
        %s454 = scalar_select %p453, %s452, 7
        %s455 = smul.addr %s454, 2
        %s456 = smul.addr %s455, 8
        %s457 = scalar_lea.vmem %s0, %s456
        %s458 = smul.u32 4, %s28
        %s459 = smul.u32 4, %s28
        %v460 = vld [vmem:[%s457] sm:$0xff]
        %v461 = vld [vmem:[%s457 + $0x8] sm:$0xff]
        %v462 = vld [vmem:[%s457 + $0x10] sm:$0xff]
        %v463 = vld [vmem:[%s457 + $0x18] sm:$0xff]
        %v464 = vld [vmem:[%s457 + $0x20] sm:$0xff]
        %v465 = vld [vmem:[%s457 + $0x28] sm:$0xff]
        %v466 = vld [vmem:[%s457 + $0x30] sm:$0xff]
        %v467 = vld [vmem:[%s457 + $0x38] sm:$0xff]
        %v468 = vmul.f32 %v460, %v460
        %v469 = vmul.f32 %v461, %v461
        %v470 = vmul.f32 %v462, %v462
        %v471 = vmul.f32 %v463, %v463
        %v472 = vmul.f32 %v464, %v464
        %v473 = vmul.f32 %v465, %v465
        %v474 = vmul.f32 %v466, %v466
        %v475 = vmul.f32 %v467, %v467
        %vm476 = vcmask 261120
        %v477 = vsel %vm476, %v468, 0.0
        %478 = vadd.xlane.f32.xlu0 %v477
        %v479 = vpop.xlane.xlu0 %478
        %v480 = vsel %vm476, %v469, 0.0
        %481 = vadd.xlane.f32.xlu0 %v480
        %v482 = vpop.xlane.xlu0 %481
        %v483 = vsel %vm476, %v470, 0.0
        %484 = vadd.xlane.f32.xlu0 %v483
        %v485 = vpop.xlane.xlu0 %484
        %v486 = vsel %vm476, %v471, 0.0
        %487 = vadd.xlane.f32.xlu0 %v486
        %v488 = vpop.xlane.xlu0 %487
        %v489 = vsel %vm476, %v472, 0.0
        %490 = vadd.xlane.f32.xlu0 %v489
        %v491 = vpop.xlane.xlu0 %490
        %v492 = vsel %vm476, %v473, 0.0
        %493 = vadd.xlane.f32.xlu0 %v492
        %v494 = vpop.xlane.xlu0 %493
        %v495 = vsel %vm476, %v474, 0.0
        %496 = vadd.xlane.f32.xlu0 %v495
        %v497 = vpop.xlane.xlu0 %496
        %v498 = vsel %vm476, %v475, 0.0
        %499 = vadd.xlane.f32.xlu0 %v498
        %v500 = vpop.xlane.xlu0 %499
        %v501 = vrcp.pop 32.0
        %v502 = vmul.f32 %v479, %v501
        %v503 = vmul.f32 %v482, %v501
        %v504 = vmul.f32 %v485, %v501
        %v505 = vmul.f32 %v488, %v501
        %v506 = vmul.f32 %v491, %v501
        %v507 = vmul.f32 %v494, %v501
        %v508 = vmul.f32 %v497, %v501
        %v509 = vmul.f32 %v500, %v501
        %v510 = vadd.f32 %v502, 1.1920929e-07
        %v511 = vadd.f32 %v503, 1.1920929e-07
        %v512 = vadd.f32 %v504, 1.1920929e-07
        %v513 = vadd.f32 %v505, 1.1920929e-07
        %v514 = vadd.f32 %v506, 1.1920929e-07
        %v515 = vadd.f32 %v507, 1.1920929e-07
        %v516 = vadd.f32 %v508, 1.1920929e-07
        %v517 = vadd.f32 %v509, 1.1920929e-07
        %v518 = vrsqrt.pop %v510
        %v519 = vrsqrt.pop %v511
        %v520 = vrsqrt.pop %v512
        %v521 = vrsqrt.pop %v513
        %v522 = vrsqrt.pop %v514
        %v523 = vrsqrt.pop %v515
        %v524 = vrsqrt.pop %v516
        %v525 = vrsqrt.pop %v517
        %v526 = vmul.f32 %v460, %v518
        %v527 = vmul.f32 %v461, %v519
        %v528 = vmul.f32 %v462, %v520
        %v529 = vmul.f32 %v463, %v521
        %v530 = vmul.f32 %v464, %v522
        %v531 = vmul.f32 %v465, %v523
        %v532 = vmul.f32 %v466, %v524
        %v533 = vmul.f32 %v467, %v525
        %v534 = vld [vmem:[%s1] sm:$0x1]
        %v536 = vlaneseq
        %v537 = vshrl.u32 %v536, 7
        %v538 = vsub.s32 0, %v537
        %v539 = vrot.slane %v534, %v538
        %v541 = vmul.f32 %v526, %v539
        %v542 = vmul.f32 %v527, %v539
        %v543 = vmul.f32 %v528, %v539
        %v544 = vmul.f32 %v529, %v539
        %v545 = vmul.f32 %v530, %v539
        %v546 = vmul.f32 %v531, %v539
        %v547 = vmul.f32 %v532, %v539
        %v548 = vmul.f32 %v533, %v539
        %v549 = vld [vmem:[%s3] sm:$0xff]
        %v550 = vld [vmem:[%s3 + $0x8] sm:$0xff]
        %v551 = vld [vmem:[%s3 + $0x10] sm:$0xff]
        %v552 = vld [vmem:[%s3 + $0x18] sm:$0xff]
        %v553 = vld [vmem:[%s4] sm:$0x1]
        %v555 = vlaneseq
        %v556 = vshrl.u32 %v555, 7
        %v557 = vsub.s32 0, %v556
        %v558 = vrot.slane %v553, %v557
        %v561 = vsel %vm476, %v541, 0
        %v564 = vsel %vm476, %v542, 0
        %v567 = vsel %vm476, %v543, 0
        %v570 = vsel %vm476, %v544, 0
        %v573 = vsel %vm476, %v545, 0
        %v576 = vsel %vm476, %v546, 0
        %v579 = vsel %vm476, %v547, 0
        %v582 = vsel %vm476, %v548, 0
        %584 = vmatprep.subr.mxu0 0.0
        %585 = vmatpush1.msra.mxu0 0.0
        %586 = vmatprep.subr.mxu0 0.0
        %587 = vmatpush1.msra.mxu0 0.0
        %588 = vmatprep.subr.mxu0 0.0
        %589 = vmatpush1.msra.mxu0 0.0
        %590 = vmatprep.subr.mxu0 0.0
        %591 = vmatpush1.msra.mxu0 0.0
        %592 = vmatprep.subr.mxu0 0.0
        %593 = vmatpush1.msra.mxu0 0.0
        %594 = vmatprep.subr.mxu0 0.0
        %595 = vmatpush1.msra.mxu0 0.0
        %596 = vmatprep.subr.mxu0 0.0
        %597 = vmatpush1.msra.mxu0 0.0
        %598 = vmatprep.subr.mxu0 0.0
        %599 = vmatpush1.msra.mxu0 0.0
        %600 = vmatprep.subr.mxu0 0.0
        %601 = vmatpush1.msra.mxu0 0.0
        %602 = vmatprep.subr.mxu0 0.0
        %603 = vmatpush1.msra.mxu0 0.0
        %604 = vmatprep.subr.mxu0 0.0
        %605 = vmatpush1.msra.mxu0 0.0
        %606 = vmatprep.subr.mxu0 0.0
        %607 = vmatpush1.msra.mxu0 0.0
        %608 = vmatprep.subr.mxu0 0.0
        %609 = vmatpush1.msra.mxu0 %v552
        %610 = vmatprep.subr.mxu0 0.0
        %611 = vmatpush1.msra.mxu0 %v551
        %612 = vmatprep.subr.mxu0 0.0
        %613 = vmatpush1.msra.mxu0 %v550
        %614 = vmatprep.subr.mxu0 0.0
        %615 = vmatpush1.msra.mxu0 %v549
        %616 = vmatprep.subr.mxu0 0.0
        %617 = vmatpush2.msra.mxu0 0.0
        %618 = vmatprep.subr.mxu0 0.0
        %619 = vmatpush2.msra.mxu0 0.0
        %620 = vmatprep.subr.mxu0 0.0
        %621 = vmatpush2.msra.mxu0 0.0
        %622 = vmatprep.subr.mxu0 0.0
        %623 = vmatpush2.msra.mxu0 0.0
        %624 = vmatprep.subr.mxu0 0.0
        %625 = vmatpush2.msra.mxu0 0.0
        %626 = vmatprep.subr.mxu0 0.0
        %627 = vmatpush2.msra.mxu0 0.0
        %628 = vmatprep.subr.mxu0 0.0
        %629 = vmatpush2.msra.mxu0 0.0
        %630 = vmatprep.subr.mxu0 0.0
        %631 = vmatpush2.msra.mxu0 0.0
        %632 = vmatprep.subr.mxu0 0.0
        %633 = vmatpush2.msra.mxu0 0.0
        %634 = vmatprep.subr.mxu0 0.0
        %635 = vmatpush2.msra.mxu0 0.0
        %636 = vmatprep.subr.mxu0 0.0
        %637 = vmatpush2.msra.mxu0 0.0
        %638 = vmatprep.subr.mxu0 0.0
        %639 = vmatpush2.msra.mxu0 0.0
        %640 = vmatprep.subr.mxu0 0.0
        %641 = vmatpush2.msra.mxu0 0.0
        %642 = vmatprep.subr.mxu0 0.0
        %643 = vmatpush2.msra.mxu0 0.0
        %644 = vmatprep.subr.mxu0 0.0
        %645 = vmatpush2.msra.mxu0 0.0
        %646 = vmatprep.subr.mxu0 0.0
        %647 = vmatpush2.msra.mxu0 0.0
        %648 = vmatprep.mubr.f32.mxu0 0.0
        %649 = vmatmul.mubr.f32.gmra.mxu0 %v561
        %v650 = vpop.f32.mrf.mxu0
        %v651 = vadd.f32 %v558, %v650
        %v652 = vpop.f32.mrf.mxu0
        %653 = vmatprep.mubr.f32.mxu0 0.0
        %654 = vmatmul.mubr.f32.gmra.mxu0 %v564
        %v655 = vpop.f32.mrf.mxu0
        %v656 = vadd.f32 %v558, %v655
        %v657 = vpop.f32.mrf.mxu0
        %658 = vmatprep.mubr.f32.mxu0 0.0
        %659 = vmatmul.mubr.f32.gmra.mxu0 %v567
        %v660 = vpop.f32.mrf.mxu0
        %v661 = vadd.f32 %v558, %v660
        %v662 = vpop.f32.mrf.mxu0
        %663 = vmatprep.mubr.f32.mxu0 0.0
        %664 = vmatmul.mubr.f32.gmra.mxu0 %v570
        %v665 = vpop.f32.mrf.mxu0
        %v666 = vadd.f32 %v558, %v665
        %v667 = vpop.f32.mrf.mxu0
        %668 = vmatprep.mubr.f32.mxu0 0.0
        %669 = vmatmul.mubr.f32.gmra.mxu0 %v573
        %v670 = vpop.f32.mrf.mxu0
        %v671 = vadd.f32 %v558, %v670
        %v672 = vpop.f32.mrf.mxu0
        %673 = vmatprep.mubr.f32.mxu0 0.0
        %674 = vmatmul.mubr.f32.gmra.mxu0 %v576
        %v675 = vpop.f32.mrf.mxu0
        %v676 = vadd.f32 %v558, %v675
        %v677 = vpop.f32.mrf.mxu0
        %678 = vmatprep.mubr.f32.mxu0 0.0
        %679 = vmatmul.mubr.f32.gmra.mxu0 %v579
        %v680 = vpop.f32.mrf.mxu0
        %v681 = vadd.f32 %v558, %v680
        %v682 = vpop.f32.mrf.mxu0
        %683 = vmatprep.mubr.f32.mxu0 0.0
        %684 = vmatmul.mubr.f32.gmra.mxu0 %v582
        %v685 = vpop.f32.mrf.mxu0
        %v686 = vadd.f32 %v558, %v685
        %v687 = vpop.f32.mrf.mxu0
        %688 = vdwg.mxu0
        %v689 = vld [vmem:[%s5] sm:$0x1]
        %v690 = vlaneseq
        %v691 = vshrl.u32 %v690, 7
        %v692 = vsub.s32 0, %v691
        %v693 = vrot.slane %v689, %v692
        %695 = vbcast.lane.b32.xlu0 %v693, 256
        %v696 = vpop.permute.xlu0 %695
        %s698 = sor.u32 256, 8
        %699 = vbcast.lane.b32.xlu0 %v693, %s698
        %v700 = vpop.permute.xlu0 %699
        %v701 = vmul.f32 %v651, %v696
        %v702 = vmul.f32 %v656, %v700
        %v703 = vmul.f32 %v661, %v696
        %v704 = vmul.f32 %v666, %v700
        %v705 = vmul.f32 %v671, %v696
        %v706 = vmul.f32 %v676, %v700
        %v707 = vmul.f32 %v681, %v696
        %v708 = vmul.f32 %v686, %v700
        %711 = vrot.lane.b32.xlu0 %v701, 112
        %v712 = vpop.permute.xlu0 %711
        %713 = vrot.lane.b32.xlu0 %v702, 112
        %v714 = vpop.permute.xlu0 %713
        %vm715 = vcmask 130048
        %v717 = vsel %vm715, %v651, 0
        %v720 = vsel %vm715, %v656, 0
        %v722 = vsel %vm715, %v712, 0
        %v724 = vsel %vm715, %v714, 0
        %726 = vmatprep.subr.mxu0 0.0
        %727 = vmatpush1.xpose.msra.mxu0 0.0
        %728 = vmatprep.subr.mxu0 0.0
        %729 = vmatpush1.xpose.msra.mxu0 0.0
        %730 = vmatprep.subr.mxu0 0.0
        %731 = vmatpush1.xpose.msra.mxu0 0.0
        %732 = vmatprep.subr.mxu0 0.0
        %733 = vmatpush1.xpose.msra.mxu0 0.0
        %734 = vmatprep.subr.mxu0 0.0
        %735 = vmatpush1.xpose.msra.mxu0 0.0
        %736 = vmatprep.subr.mxu0 0.0
        %737 = vmatpush1.xpose.msra.mxu0 0.0
        %738 = vmatprep.subr.mxu0 0.0
        %739 = vmatpush1.xpose.msra.mxu0 0.0
        %740 = vmatprep.subr.mxu0 0.0
        %741 = vmatpush1.xpose.msra.mxu0 0.0
        %742 = vmatprep.subr.mxu0 0.0
        %743 = vmatpush1.xpose.msra.mxu0 0.0
        %744 = vmatprep.subr.mxu0 0.0
        %745 = vmatpush1.xpose.msra.mxu0 0.0
        %746 = vmatprep.subr.mxu0 0.0
        %747 = vmatpush1.xpose.msra.mxu0 0.0
        %748 = vmatprep.subr.mxu0 0.0
        %749 = vmatpush1.xpose.msra.mxu0 0.0
        %750 = vmatprep.subr.mxu0 0.0
        %751 = vmatpush1.xpose.msra.mxu0 0.0
        %752 = vmatprep.subr.mxu0 0.0
        %753 = vmatpush1.xpose.msra.mxu0 0.0
        %754 = vmatprep.subr.mxu0 0.0
        %755 = vmatpush1.xpose.msra.mxu0 %v724
        %756 = vmatprep.subr.mxu0 0.0
        %757 = vmatpush1.xpose.msra.mxu0 %v722
        %758 = vmatprep.subr.mxu0 0.0
        %759 = vmatpush2.xpose.msra.mxu0 0.0
        %760 = vmatprep.subr.mxu0 0.0
        %761 = vmatpush2.xpose.msra.mxu0 0.0
        %762 = vmatprep.subr.mxu0 0.0
        %763 = vmatpush2.xpose.msra.mxu0 0.0
        %764 = vmatprep.subr.mxu0 0.0
        %765 = vmatpush2.xpose.msra.mxu0 0.0
        %766 = vmatprep.subr.mxu0 0.0
        %767 = vmatpush2.xpose.msra.mxu0 0.0
        %768 = vmatprep.subr.mxu0 0.0
        %769 = vmatpush2.xpose.msra.mxu0 0.0
        %770 = vmatprep.subr.mxu0 0.0
        %771 = vmatpush2.xpose.msra.mxu0 0.0
        %772 = vmatprep.subr.mxu0 0.0
        %773 = vmatpush2.xpose.msra.mxu0 0.0
        %774 = vmatprep.subr.mxu0 0.0
        %775 = vmatpush2.xpose.msra.mxu0 0.0
        %776 = vmatprep.subr.mxu0 0.0
        %777 = vmatpush2.xpose.msra.mxu0 0.0
        %778 = vmatprep.subr.mxu0 0.0
        %779 = vmatpush2.xpose.msra.mxu0 0.0
        %780 = vmatprep.subr.mxu0 0.0
        %781 = vmatpush2.xpose.msra.mxu0 0.0
        %782 = vmatprep.subr.mxu0 0.0
        %783 = vmatpush2.xpose.msra.mxu0 0.0
        %784 = vmatprep.subr.mxu0 0.0
        %785 = vmatpush2.xpose.msra.mxu0 0.0
        %786 = vmatprep.subr.mxu0 0.0
        %787 = vmatpush2.xpose.msra.mxu0 0.0
        %788 = vmatprep.subr.mxu0 0.0
        %789 = vmatpush2.xpose.msra.mxu0 0.0
        %790 = vmatprep.mubr.f32.mxu0 0.0
        %791 = vmatmul.mubr.f32.gmra.mxu0 %v717
        %v792 = vpop.f32.mrf.mxu0
        %v793 = vadd.f32 0.0, %v792
        %v794 = vpop.f32.mrf.mxu0
        %795 = vmatprep.mubr.f32.mxu0 0.0
        %796 = vmatmul.mubr.f32.gmra.mxu0 %v720
        %v797 = vpop.f32.mrf.mxu0
        %v798 = vadd.f32 0.0, %v797
        %v799 = vpop.f32.mrf.mxu0
        %800 = vdwg.mxu0
        %803 = vrot.lane.b32.xlu0 %v703, 112
        %v804 = vpop.permute.xlu0 %803
        %805 = vrot.lane.b32.xlu0 %v704, 112
        %v806 = vpop.permute.xlu0 %805
        %v808 = vsel %vm715, %v661, 0
        %v811 = vsel %vm715, %v666, 0
        %v813 = vsel %vm715, %v804, 0
        %v815 = vsel %vm715, %v806, 0
        %817 = vmatprep.subr.mxu0 0.0
        %818 = vmatpush1.xpose.msra.mxu0 0.0
        %819 = vmatprep.subr.mxu0 0.0
        %820 = vmatpush1.xpose.msra.mxu0 0.0
        %821 = vmatprep.subr.mxu0 0.0
        %822 = vmatpush1.xpose.msra.mxu0 0.0
        %823 = vmatprep.subr.mxu0 0.0
        %824 = vmatpush1.xpose.msra.mxu0 0.0
        %825 = vmatprep.subr.mxu0 0.0
        %826 = vmatpush1.xpose.msra.mxu0 0.0
        %827 = vmatprep.subr.mxu0 0.0
        %828 = vmatpush1.xpose.msra.mxu0 0.0
        %829 = vmatprep.subr.mxu0 0.0
        %830 = vmatpush1.xpose.msra.mxu0 0.0
        %831 = vmatprep.subr.mxu0 0.0
        %832 = vmatpush1.xpose.msra.mxu0 0.0
        %833 = vmatprep.subr.mxu0 0.0
        %834 = vmatpush1.xpose.msra.mxu0 0.0
        %835 = vmatprep.subr.mxu0 0.0
        %836 = vmatpush1.xpose.msra.mxu0 0.0
        %837 = vmatprep.subr.mxu0 0.0
        %838 = vmatpush1.xpose.msra.mxu0 0.0
        %839 = vmatprep.subr.mxu0 0.0
        %840 = vmatpush1.xpose.msra.mxu0 0.0
        %841 = vmatprep.subr.mxu0 0.0
        %842 = vmatpush1.xpose.msra.mxu0 0.0
        %843 = vmatprep.subr.mxu0 0.0
        %844 = vmatpush1.xpose.msra.mxu0 0.0
        %845 = vmatprep.subr.mxu0 0.0
        %846 = vmatpush1.xpose.msra.mxu0 %v815
        %847 = vmatprep.subr.mxu0 0.0
        %848 = vmatpush1.xpose.msra.mxu0 %v813
        %849 = vmatprep.subr.mxu0 0.0
        %850 = vmatpush2.xpose.msra.mxu0 0.0
        %851 = vmatprep.subr.mxu0 0.0
        %852 = vmatpush2.xpose.msra.mxu0 0.0
        %853 = vmatprep.subr.mxu0 0.0
        %854 = vmatpush2.xpose.msra.mxu0 0.0
        %855 = vmatprep.subr.mxu0 0.0
        %856 = vmatpush2.xpose.msra.mxu0 0.0
        %857 = vmatprep.subr.mxu0 0.0
        %858 = vmatpush2.xpose.msra.mxu0 0.0
        %859 = vmatprep.subr.mxu0 0.0
        %860 = vmatpush2.xpose.msra.mxu0 0.0
        %861 = vmatprep.subr.mxu0 0.0
        %862 = vmatpush2.xpose.msra.mxu0 0.0
        %863 = vmatprep.subr.mxu0 0.0
        %864 = vmatpush2.xpose.msra.mxu0 0.0
        %865 = vmatprep.subr.mxu0 0.0
        %866 = vmatpush2.xpose.msra.mxu0 0.0
        %867 = vmatprep.subr.mxu0 0.0
        %868 = vmatpush2.xpose.msra.mxu0 0.0
        %869 = vmatprep.subr.mxu0 0.0
        %870 = vmatpush2.xpose.msra.mxu0 0.0
        %871 = vmatprep.subr.mxu0 0.0
        %872 = vmatpush2.xpose.msra.mxu0 0.0
        %873 = vmatprep.subr.mxu0 0.0
        %874 = vmatpush2.xpose.msra.mxu0 0.0
        %875 = vmatprep.subr.mxu0 0.0
        %876 = vmatpush2.xpose.msra.mxu0 0.0
        %877 = vmatprep.subr.mxu0 0.0
        %878 = vmatpush2.xpose.msra.mxu0 0.0
        %879 = vmatprep.subr.mxu0 0.0
        %880 = vmatpush2.xpose.msra.mxu0 0.0
        %881 = vmatprep.mubr.f32.mxu0 0.0
        %882 = vmatmul.mubr.f32.gmra.mxu0 %v808
        %v883 = vpop.f32.mrf.mxu0
        %v884 = vadd.f32 0.0, %v883
        %v885 = vpop.f32.mrf.mxu0
        %886 = vmatprep.mubr.f32.mxu0 0.0
        %887 = vmatmul.mubr.f32.gmra.mxu0 %v811
        %v888 = vpop.f32.mrf.mxu0
        %v889 = vadd.f32 0.0, %v888
        %v890 = vpop.f32.mrf.mxu0
        %891 = vdwg.mxu0
        %894 = vrot.lane.b32.xlu0 %v705, 112
        %v895 = vpop.permute.xlu0 %894
        %896 = vrot.lane.b32.xlu0 %v706, 112
        %v897 = vpop.permute.xlu0 %896
        %v899 = vsel %vm715, %v671, 0
        %v902 = vsel %vm715, %v676, 0
        %v904 = vsel %vm715, %v895, 0
        %v906 = vsel %vm715, %v897, 0
        %908 = vmatprep.subr.mxu0 0.0
        %909 = vmatpush1.xpose.msra.mxu0 0.0
        %910 = vmatprep.subr.mxu0 0.0
        %911 = vmatpush1.xpose.msra.mxu0 0.0
        %912 = vmatprep.subr.mxu0 0.0
        %913 = vmatpush1.xpose.msra.mxu0 0.0
        %914 = vmatprep.subr.mxu0 0.0
        %915 = vmatpush1.xpose.msra.mxu0 0.0
        %916 = vmatprep.subr.mxu0 0.0
        %917 = vmatpush1.xpose.msra.mxu0 0.0
        %918 = vmatprep.subr.mxu0 0.0
        %919 = vmatpush1.xpose.msra.mxu0 0.0
        %920 = vmatprep.subr.mxu0 0.0
        %921 = vmatpush1.xpose.msra.mxu0 0.0
        %922 = vmatprep.subr.mxu0 0.0
        %923 = vmatpush1.xpose.msra.mxu0 0.0
        %924 = vmatprep.subr.mxu0 0.0
        %925 = vmatpush1.xpose.msra.mxu0 0.0
        %926 = vmatprep.subr.mxu0 0.0
        %927 = vmatpush1.xpose.msra.mxu0 0.0
        %928 = vmatprep.subr.mxu0 0.0
        %929 = vmatpush1.xpose.msra.mxu0 0.0
        %930 = vmatprep.subr.mxu0 0.0
        %931 = vmatpush1.xpose.msra.mxu0 0.0
        %932 = vmatprep.subr.mxu0 0.0
        %933 = vmatpush1.xpose.msra.mxu0 0.0
        %934 = vmatprep.subr.mxu0 0.0
        %935 = vmatpush1.xpose.msra.mxu0 0.0
        %936 = vmatprep.subr.mxu0 0.0
        %937 = vmatpush1.xpose.msra.mxu0 %v906
        %938 = vmatprep.subr.mxu0 0.0
        %939 = vmatpush1.xpose.msra.mxu0 %v904
        %940 = vmatprep.subr.mxu0 0.0
        %941 = vmatpush2.xpose.msra.mxu0 0.0
        %942 = vmatprep.subr.mxu0 0.0
        %943 = vmatpush2.xpose.msra.mxu0 0.0
        %944 = vmatprep.subr.mxu0 0.0
        %945 = vmatpush2.xpose.msra.mxu0 0.0
        %946 = vmatprep.subr.mxu0 0.0
        %947 = vmatpush2.xpose.msra.mxu0 0.0
        %948 = vmatprep.subr.mxu0 0.0
        %949 = vmatpush2.xpose.msra.mxu0 0.0
        %950 = vmatprep.subr.mxu0 0.0
        %951 = vmatpush2.xpose.msra.mxu0 0.0
        %952 = vmatprep.subr.mxu0 0.0
        %953 = vmatpush2.xpose.msra.mxu0 0.0
        %954 = vmatprep.subr.mxu0 0.0
        %955 = vmatpush2.xpose.msra.mxu0 0.0
        %956 = vmatprep.subr.mxu0 0.0
        %957 = vmatpush2.xpose.msra.mxu0 0.0
        %958 = vmatprep.subr.mxu0 0.0
        %959 = vmatpush2.xpose.msra.mxu0 0.0
        %960 = vmatprep.subr.mxu0 0.0
        %961 = vmatpush2.xpose.msra.mxu0 0.0
        %962 = vmatprep.subr.mxu0 0.0
        %963 = vmatpush2.xpose.msra.mxu0 0.0
        %964 = vmatprep.subr.mxu0 0.0
        %965 = vmatpush2.xpose.msra.mxu0 0.0
        %966 = vmatprep.subr.mxu0 0.0
        %967 = vmatpush2.xpose.msra.mxu0 0.0
        %968 = vmatprep.subr.mxu0 0.0
        %969 = vmatpush2.xpose.msra.mxu0 0.0
        %970 = vmatprep.subr.mxu0 0.0
        %971 = vmatpush2.xpose.msra.mxu0 0.0
        %972 = vmatprep.mubr.f32.mxu0 0.0
        %973 = vmatmul.mubr.f32.gmra.mxu0 %v899
        %v974 = vpop.f32.mrf.mxu0
        %v975 = vadd.f32 0.0, %v974
        %v976 = vpop.f32.mrf.mxu0
        %977 = vmatprep.mubr.f32.mxu0 0.0
        %978 = vmatmul.mubr.f32.gmra.mxu0 %v902
        %v979 = vpop.f32.mrf.mxu0
        %v980 = vadd.f32 0.0, %v979
        %v981 = vpop.f32.mrf.mxu0
        %982 = vdwg.mxu0
        %985 = vrot.lane.b32.xlu0 %v707, 112
        %v986 = vpop.permute.xlu0 %985
        %987 = vrot.lane.b32.xlu0 %v708, 112
        %v988 = vpop.permute.xlu0 %987
        %v990 = vsel %vm715, %v681, 0
        %v993 = vsel %vm715, %v686, 0
        %v995 = vsel %vm715, %v986, 0
        %v997 = vsel %vm715, %v988, 0
        %999 = vmatprep.subr.mxu0 0.0
        %1000 = vmatpush1.xpose.msra.mxu0 0.0
        %1001 = vmatprep.subr.mxu0 0.0
        %1002 = vmatpush1.xpose.msra.mxu0 0.0
        %1003 = vmatprep.subr.mxu0 0.0
        %1004 = vmatpush1.xpose.msra.mxu0 0.0
        %1005 = vmatprep.subr.mxu0 0.0
        %1006 = vmatpush1.xpose.msra.mxu0 0.0
        %1007 = vmatprep.subr.mxu0 0.0
        %1008 = vmatpush1.xpose.msra.mxu0 0.0
        %1009 = vmatprep.subr.mxu0 0.0
        %1010 = vmatpush1.xpose.msra.mxu0 0.0
        %1011 = vmatprep.subr.mxu0 0.0
        %1012 = vmatpush1.xpose.msra.mxu0 0.0
        %1013 = vmatprep.subr.mxu0 0.0
        %1014 = vmatpush1.xpose.msra.mxu0 0.0
        %1015 = vmatprep.subr.mxu0 0.0
        %1016 = vmatpush1.xpose.msra.mxu0 0.0
        %1017 = vmatprep.subr.mxu0 0.0
        %1018 = vmatpush1.xpose.msra.mxu0 0.0
        %1019 = vmatprep.subr.mxu0 0.0
        %1020 = vmatpush1.xpose.msra.mxu0 0.0
        %1021 = vmatprep.subr.mxu0 0.0
        %1022 = vmatpush1.xpose.msra.mxu0 0.0
        %1023 = vmatprep.subr.mxu0 0.0
        %1024 = vmatpush1.xpose.msra.mxu0 0.0
        %1025 = vmatprep.subr.mxu0 0.0
        %1026 = vmatpush1.xpose.msra.mxu0 0.0
        %1027 = vmatprep.subr.mxu0 0.0
        %1028 = vmatpush1.xpose.msra.mxu0 %v997
        %1029 = vmatprep.subr.mxu0 0.0
        %1030 = vmatpush1.xpose.msra.mxu0 %v995
        %1031 = vmatprep.subr.mxu0 0.0
        %1032 = vmatpush2.xpose.msra.mxu0 0.0
        %1033 = vmatprep.subr.mxu0 0.0
        %1034 = vmatpush2.xpose.msra.mxu0 0.0
        %1035 = vmatprep.subr.mxu0 0.0
        %1036 = vmatpush2.xpose.msra.mxu0 0.0
        %1037 = vmatprep.subr.mxu0 0.0
        %1038 = vmatpush2.xpose.msra.mxu0 0.0
        %1039 = vmatprep.subr.mxu0 0.0
        %1040 = vmatpush2.xpose.msra.mxu0 0.0
        %1041 = vmatprep.subr.mxu0 0.0
        %1042 = vmatpush2.xpose.msra.mxu0 0.0
        %1043 = vmatprep.subr.mxu0 0.0
        %1044 = vmatpush2.xpose.msra.mxu0 0.0
        %1045 = vmatprep.subr.mxu0 0.0
        %1046 = vmatpush2.xpose.msra.mxu0 0.0
        %1047 = vmatprep.subr.mxu0 0.0
        %1048 = vmatpush2.xpose.msra.mxu0 0.0
        %1049 = vmatprep.subr.mxu0 0.0
        %1050 = vmatpush2.xpose.msra.mxu0 0.0
        %1051 = vmatprep.subr.mxu0 0.0
        %1052 = vmatpush2.xpose.msra.mxu0 0.0
        %1053 = vmatprep.subr.mxu0 0.0
        %1054 = vmatpush2.xpose.msra.mxu0 0.0
        %1055 = vmatprep.subr.mxu0 0.0
        %1056 = vmatpush2.xpose.msra.mxu0 0.0
        %1057 = vmatprep.subr.mxu0 0.0
        %1058 = vmatpush2.xpose.msra.mxu0 0.0
        %1059 = vmatprep.subr.mxu0 0.0
        %1060 = vmatpush2.xpose.msra.mxu0 0.0
        %1061 = vmatprep.subr.mxu0 0.0
        %1062 = vmatpush2.xpose.msra.mxu0 0.0
        %1063 = vmatprep.mubr.f32.mxu0 0.0
        %1064 = vmatmul.mubr.f32.gmra.mxu0 %v990
        %v1065 = vpop.f32.mrf.mxu0
        %v1066 = vadd.f32 0.0, %v1065
        %v1067 = vpop.f32.mrf.mxu0
        %1068 = vmatprep.mubr.f32.mxu0 0.0
        %1069 = vmatmul.mubr.f32.gmra.mxu0 %v993
        %v1070 = vpop.f32.mrf.mxu0
        %v1071 = vadd.f32 0.0, %v1070
        %v1072 = vpop.f32.mrf.mxu0
        %1073 = vdwg.mxu0
        %v1074 = vlaneseq
        %v1075 = vshrl.u32 %v1074, 7
        %v1076 = vadd.s32 %v1075, 8
        %v1077 = vlaneseq
        %v1078 = vand.u32 %v1077, 127
        %vm1079 = vcmp.ge.s32.totalorder %v1075, %v1078
        %vm1080 = vcmp.ge.s32.totalorder %v1076, %v1078
        %v1081 = vsel %vm1079, 1, 0
        %v1082 = vsel %vm1080, 1, 0
        %vm1083 = vcmp.eq.s32.totalorder %v1081, 1
        %vm1084 = vcmp.eq.s32.totalorder %v1082, 1
        %v1085 = vsel %vm1083, %v793, 0.0
        %v1086 = vsel %vm1084, %v798, 0.0
        %v1087 = vsel %vm1083, %v884, 0.0
        %v1088 = vsel %vm1084, %v889, 0.0
        %v1089 = vsel %vm1083, %v975, 0.0
        %v1090 = vsel %vm1084, %v980, 0.0
        %v1091 = vsel %vm1083, %v1066, 0.0
        %v1092 = vsel %vm1084, %v1071, 0.0
        %1093 = vrot.lane.b32.xlu0 %v651, 96
        %v1094 = vpop.permute.xlu0 %1093
        %1095 = vrot.lane.b32.xlu0 %v656, 96
        %v1096 = vpop.permute.xlu0 %1095
        %v1100 = vsel %vm715, %v1085, 0
        %v1103 = vsel %vm715, %v1086, 0
        %1105 = vmatprep.subr.mxu0 0.0
        %1106 = vmatpush1.msra.mxu0 0.0
        %1107 = vmatprep.subr.mxu0 0.0
        %1108 = vmatpush1.msra.mxu0 0.0
        %1109 = vmatprep.subr.mxu0 0.0
        %1110 = vmatpush1.msra.mxu0 0.0
        %1111 = vmatprep.subr.mxu0 0.0
        %1112 = vmatpush1.msra.mxu0 0.0
        %1113 = vmatprep.subr.mxu0 0.0
        %1114 = vmatpush1.msra.mxu0 0.0
        %1115 = vmatprep.subr.mxu0 0.0
        %1116 = vmatpush1.msra.mxu0 0.0
        %1117 = vmatprep.subr.mxu0 0.0
        %1118 = vmatpush1.msra.mxu0 0.0
        %1119 = vmatprep.subr.mxu0 0.0
        %1120 = vmatpush1.msra.mxu0 0.0
        %1121 = vmatprep.subr.mxu0 0.0
        %1122 = vmatpush1.msra.mxu0 0.0
        %1123 = vmatprep.subr.mxu0 0.0
        %1124 = vmatpush1.msra.mxu0 0.0
        %1125 = vmatprep.subr.mxu0 0.0
        %1126 = vmatpush1.msra.mxu0 0.0
        %1127 = vmatprep.subr.mxu0 0.0
        %1128 = vmatpush1.msra.mxu0 0.0
        %1129 = vmatprep.subr.mxu0 0.0
        %1130 = vmatpush1.msra.mxu0 0.0
        %1131 = vmatprep.subr.mxu0 0.0
        %1132 = vmatpush1.msra.mxu0 0.0
        %1133 = vmatprep.subr.mxu0 0.0
        %1134 = vmatpush1.msra.mxu0 %v1096
        %1135 = vmatprep.subr.mxu0 0.0
        %1136 = vmatpush1.msra.mxu0 %v1094
        %1137 = vmatprep.subr.mxu0 0.0
        %1138 = vmatpush2.msra.mxu0 0.0
        %1139 = vmatprep.subr.mxu0 0.0
        %1140 = vmatpush2.msra.mxu0 0.0
        %1141 = vmatprep.subr.mxu0 0.0
        %1142 = vmatpush2.msra.mxu0 0.0
        %1143 = vmatprep.subr.mxu0 0.0
        %1144 = vmatpush2.msra.mxu0 0.0
        %1145 = vmatprep.subr.mxu0 0.0
        %1146 = vmatpush2.msra.mxu0 0.0
        %1147 = vmatprep.subr.mxu0 0.0
        %1148 = vmatpush2.msra.mxu0 0.0
        %1149 = vmatprep.subr.mxu0 0.0
        %1150 = vmatpush2.msra.mxu0 0.0
        %1151 = vmatprep.subr.mxu0 0.0
        %1152 = vmatpush2.msra.mxu0 0.0
        %1153 = vmatprep.subr.mxu0 0.0
        %1154 = vmatpush2.msra.mxu0 0.0
        %1155 = vmatprep.subr.mxu0 0.0
        %1156 = vmatpush2.msra.mxu0 0.0
        %1157 = vmatprep.subr.mxu0 0.0
        %1158 = vmatpush2.msra.mxu0 0.0
        %1159 = vmatprep.subr.mxu0 0.0
        %1160 = vmatpush2.msra.mxu0 0.0
        %1161 = vmatprep.subr.mxu0 0.0
        %1162 = vmatpush2.msra.mxu0 0.0
        %1163 = vmatprep.subr.mxu0 0.0
        %1164 = vmatpush2.msra.mxu0 0.0
        %1165 = vmatprep.subr.mxu0 0.0
        %1166 = vmatpush2.msra.mxu0 0.0
        %1167 = vmatprep.subr.mxu0 0.0
        %1168 = vmatpush2.msra.mxu0 0.0
        %1169 = vmatprep.mubr.f32.mxu0 0.0
        %1170 = vmatmul.mubr.f32.gmra.mxu0 %v1100
        %v1171 = vpop.f32.mrf.mxu0
        %v1172 = vadd.f32 0.0, %v1171
        %v1173 = vpop.f32.mrf.mxu0
        %1174 = vmatprep.mubr.f32.mxu0 0.0
        %1175 = vmatmul.mubr.f32.gmra.mxu0 %v1103
        %v1176 = vpop.f32.mrf.mxu0
        %v1177 = vadd.f32 0.0, %v1176
        %v1178 = vpop.f32.mrf.mxu0
        %1179 = vdwg.mxu0
        %1180 = vrot.lane.b32.xlu0 %v661, 96
        %v1181 = vpop.permute.xlu0 %1180
        %1182 = vrot.lane.b32.xlu0 %v666, 96
        %v1183 = vpop.permute.xlu0 %1182
        %v1187 = vsel %vm715, %v1087, 0
        %v1190 = vsel %vm715, %v1088, 0
        %1192 = vmatprep.subr.mxu0 0.0
        %1193 = vmatpush1.msra.mxu0 0.0
        %1194 = vmatprep.subr.mxu0 0.0
        %1195 = vmatpush1.msra.mxu0 0.0
        %1196 = vmatprep.subr.mxu0 0.0
        %1197 = vmatpush1.msra.mxu0 0.0
        %1198 = vmatprep.subr.mxu0 0.0
        %1199 = vmatpush1.msra.mxu0 0.0
        %1200 = vmatprep.subr.mxu0 0.0
        %1201 = vmatpush1.msra.mxu0 0.0
        %1202 = vmatprep.subr.mxu0 0.0
        %1203 = vmatpush1.msra.mxu0 0.0
        %1204 = vmatprep.subr.mxu0 0.0
        %1205 = vmatpush1.msra.mxu0 0.0
        %1206 = vmatprep.subr.mxu0 0.0
        %1207 = vmatpush1.msra.mxu0 0.0
        %1208 = vmatprep.subr.mxu0 0.0
        %1209 = vmatpush1.msra.mxu0 0.0
        %1210 = vmatprep.subr.mxu0 0.0
        %1211 = vmatpush1.msra.mxu0 0.0
        %1212 = vmatprep.subr.mxu0 0.0
        %1213 = vmatpush1.msra.mxu0 0.0
        %1214 = vmatprep.subr.mxu0 0.0
        %1215 = vmatpush1.msra.mxu0 0.0
        %1216 = vmatprep.subr.mxu0 0.0
        %1217 = vmatpush1.msra.mxu0 0.0
        %1218 = vmatprep.subr.mxu0 0.0
        %1219 = vmatpush1.msra.mxu0 0.0
        %1220 = vmatprep.subr.mxu0 0.0
        %1221 = vmatpush1.msra.mxu0 %v1183
        %1222 = vmatprep.subr.mxu0 0.0
        %1223 = vmatpush1.msra.mxu0 %v1181
        %1224 = vmatprep.subr.mxu0 0.0
        %1225 = vmatpush2.msra.mxu0 0.0
        %1226 = vmatprep.subr.mxu0 0.0
        %1227 = vmatpush2.msra.mxu0 0.0
        %1228 = vmatprep.subr.mxu0 0.0
        %1229 = vmatpush2.msra.mxu0 0.0
        %1230 = vmatprep.subr.mxu0 0.0
        %1231 = vmatpush2.msra.mxu0 0.0
        %1232 = vmatprep.subr.mxu0 0.0
        %1233 = vmatpush2.msra.mxu0 0.0
        %1234 = vmatprep.subr.mxu0 0.0
        %1235 = vmatpush2.msra.mxu0 0.0
        %1236 = vmatprep.subr.mxu0 0.0
        %1237 = vmatpush2.msra.mxu0 0.0
        %1238 = vmatprep.subr.mxu0 0.0
        %1239 = vmatpush2.msra.mxu0 0.0
        %1240 = vmatprep.subr.mxu0 0.0
        %1241 = vmatpush2.msra.mxu0 0.0
        %1242 = vmatprep.subr.mxu0 0.0
        %1243 = vmatpush2.msra.mxu0 0.0
        %1244 = vmatprep.subr.mxu0 0.0
        %1245 = vmatpush2.msra.mxu0 0.0
        %1246 = vmatprep.subr.mxu0 0.0
        %1247 = vmatpush2.msra.mxu0 0.0
        %1248 = vmatprep.subr.mxu0 0.0
        %1249 = vmatpush2.msra.mxu0 0.0
        %1250 = vmatprep.subr.mxu0 0.0
        %1251 = vmatpush2.msra.mxu0 0.0
        %1252 = vmatprep.subr.mxu0 0.0
        %1253 = vmatpush2.msra.mxu0 0.0
        %1254 = vmatprep.subr.mxu0 0.0
        %1255 = vmatpush2.msra.mxu0 0.0
        %1256 = vmatprep.mubr.f32.mxu0 0.0
        %1257 = vmatmul.mubr.f32.gmra.mxu0 %v1187
        %v1258 = vpop.f32.mrf.mxu0
        %v1259 = vadd.f32 0.0, %v1258
        %v1260 = vpop.f32.mrf.mxu0
        %1261 = vmatprep.mubr.f32.mxu0 0.0
        %1262 = vmatmul.mubr.f32.gmra.mxu0 %v1190
        %v1263 = vpop.f32.mrf.mxu0
        %v1264 = vadd.f32 0.0, %v1263
        %v1265 = vpop.f32.mrf.mxu0
        %1266 = vdwg.mxu0
        %1267 = vrot.lane.b32.xlu0 %v671, 96
        %v1268 = vpop.permute.xlu0 %1267
        %1269 = vrot.lane.b32.xlu0 %v676, 96
        %v1270 = vpop.permute.xlu0 %1269
        %v1274 = vsel %vm715, %v1089, 0
        %v1277 = vsel %vm715, %v1090, 0
        %1279 = vmatprep.subr.mxu0 0.0
        %1280 = vmatpush1.msra.mxu0 0.0
        %1281 = vmatprep.subr.mxu0 0.0
        %1282 = vmatpush1.msra.mxu0 0.0
        %1283 = vmatprep.subr.mxu0 0.0
        %1284 = vmatpush1.msra.mxu0 0.0
        %1285 = vmatprep.subr.mxu0 0.0
        %1286 = vmatpush1.msra.mxu0 0.0
        %1287 = vmatprep.subr.mxu0 0.0
        %1288 = vmatpush1.msra.mxu0 0.0
        %1289 = vmatprep.subr.mxu0 0.0
        %1290 = vmatpush1.msra.mxu0 0.0
        %1291 = vmatprep.subr.mxu0 0.0
        %1292 = vmatpush1.msra.mxu0 0.0
        %1293 = vmatprep.subr.mxu0 0.0
        %1294 = vmatpush1.msra.mxu0 0.0
        %1295 = vmatprep.subr.mxu0 0.0
        %1296 = vmatpush1.msra.mxu0 0.0
        %1297 = vmatprep.subr.mxu0 0.0
        %1298 = vmatpush1.msra.mxu0 0.0
        %1299 = vmatprep.subr.mxu0 0.0
        %1300 = vmatpush1.msra.mxu0 0.0
        %1301 = vmatprep.subr.mxu0 0.0
        %1302 = vmatpush1.msra.mxu0 0.0
        %1303 = vmatprep.subr.mxu0 0.0
        %1304 = vmatpush1.msra.mxu0 0.0
        %1305 = vmatprep.subr.mxu0 0.0
        %1306 = vmatpush1.msra.mxu0 0.0
        %1307 = vmatprep.subr.mxu0 0.0
        %1308 = vmatpush1.msra.mxu0 %v1270
        %1309 = vmatprep.subr.mxu0 0.0
        %1310 = vmatpush1.msra.mxu0 %v1268
        %1311 = vmatprep.subr.mxu0 0.0
        %1312 = vmatpush2.msra.mxu0 0.0
        %1313 = vmatprep.subr.mxu0 0.0
        %1314 = vmatpush2.msra.mxu0 0.0
        %1315 = vmatprep.subr.mxu0 0.0
        %1316 = vmatpush2.msra.mxu0 0.0
        %1317 = vmatprep.subr.mxu0 0.0
        %1318 = vmatpush2.msra.mxu0 0.0
        %1319 = vmatprep.subr.mxu0 0.0
        %1320 = vmatpush2.msra.mxu0 0.0
        %1321 = vmatprep.subr.mxu0 0.0
        %1322 = vmatpush2.msra.mxu0 0.0
        %1323 = vmatprep.subr.mxu0 0.0
        %1324 = vmatpush2.msra.mxu0 0.0
        %1325 = vmatprep.subr.mxu0 0.0
        %1326 = vmatpush2.msra.mxu0 0.0
        %1327 = vmatprep.subr.mxu0 0.0
        %1328 = vmatpush2.msra.mxu0 0.0
        %1329 = vmatprep.subr.mxu0 0.0
        %1330 = vmatpush2.msra.mxu0 0.0
        %1331 = vmatprep.subr.mxu0 0.0
        %1332 = vmatpush2.msra.mxu0 0.0
        %1333 = vmatprep.subr.mxu0 0.0
        %1334 = vmatpush2.msra.mxu0 0.0
        %1335 = vmatprep.subr.mxu0 0.0
        %1336 = vmatpush2.msra.mxu0 0.0
        %1337 = vmatprep.subr.mxu0 0.0
        %1338 = vmatpush2.msra.mxu0 0.0
        %1339 = vmatprep.subr.mxu0 0.0
        %1340 = vmatpush2.msra.mxu0 0.0
        %1341 = vmatprep.subr.mxu0 0.0
        %1342 = vmatpush2.msra.mxu0 0.0
        %1343 = vmatprep.mubr.f32.mxu0 0.0
        %1344 = vmatmul.mubr.f32.gmra.mxu0 %v1274
        %v1345 = vpop.f32.mrf.mxu0
        %v1346 = vadd.f32 0.0, %v1345
        %v1347 = vpop.f32.mrf.mxu0
        %1348 = vmatprep.mubr.f32.mxu0 0.0
        %1349 = vmatmul.mubr.f32.gmra.mxu0 %v1277
        %v1350 = vpop.f32.mrf.mxu0
        %v1351 = vadd.f32 0.0, %v1350
        %v1352 = vpop.f32.mrf.mxu0
        %1353 = vdwg.mxu0
        %1354 = vrot.lane.b32.xlu0 %v681, 96
        %v1355 = vpop.permute.xlu0 %1354
        %1356 = vrot.lane.b32.xlu0 %v686, 96
        %v1357 = vpop.permute.xlu0 %1356
        %v1361 = vsel %vm715, %v1091, 0
        %v1364 = vsel %vm715, %v1092, 0
        %1366 = vmatprep.subr.mxu0 0.0
        %1367 = vmatpush1.msra.mxu0 0.0
        %1368 = vmatprep.subr.mxu0 0.0
        %1369 = vmatpush1.msra.mxu0 0.0
        %1370 = vmatprep.subr.mxu0 0.0
        %1371 = vmatpush1.msra.mxu0 0.0
        %1372 = vmatprep.subr.mxu0 0.0
        %1373 = vmatpush1.msra.mxu0 0.0
        %1374 = vmatprep.subr.mxu0 0.0
        %1375 = vmatpush1.msra.mxu0 0.0
        %1376 = vmatprep.subr.mxu0 0.0
        %1377 = vmatpush1.msra.mxu0 0.0
        %1378 = vmatprep.subr.mxu0 0.0
        %1379 = vmatpush1.msra.mxu0 0.0
        %1380 = vmatprep.subr.mxu0 0.0
        %1381 = vmatpush1.msra.mxu0 0.0
        %1382 = vmatprep.subr.mxu0 0.0
        %1383 = vmatpush1.msra.mxu0 0.0
        %1384 = vmatprep.subr.mxu0 0.0
        %1385 = vmatpush1.msra.mxu0 0.0
        %1386 = vmatprep.subr.mxu0 0.0
        %1387 = vmatpush1.msra.mxu0 0.0
        %1388 = vmatprep.subr.mxu0 0.0
        %1389 = vmatpush1.msra.mxu0 0.0
        %1390 = vmatprep.subr.mxu0 0.0
        %1391 = vmatpush1.msra.mxu0 0.0
        %1392 = vmatprep.subr.mxu0 0.0
        %1393 = vmatpush1.msra.mxu0 0.0
        %1394 = vmatprep.subr.mxu0 0.0
        %1395 = vmatpush1.msra.mxu0 %v1357
        %1396 = vmatprep.subr.mxu0 0.0
        %1397 = vmatpush1.msra.mxu0 %v1355
        %1398 = vmatprep.subr.mxu0 0.0
        %1399 = vmatpush2.msra.mxu0 0.0
        %1400 = vmatprep.subr.mxu0 0.0
        %1401 = vmatpush2.msra.mxu0 0.0
        %1402 = vmatprep.subr.mxu0 0.0
        %1403 = vmatpush2.msra.mxu0 0.0
        %1404 = vmatprep.subr.mxu0 0.0
        %1405 = vmatpush2.msra.mxu0 0.0
        %1406 = vmatprep.subr.mxu0 0.0
        %1407 = vmatpush2.msra.mxu0 0.0
        %1408 = vmatprep.subr.mxu0 0.0
        %1409 = vmatpush2.msra.mxu0 0.0
        %1410 = vmatprep.subr.mxu0 0.0
        %1411 = vmatpush2.msra.mxu0 0.0
        %1412 = vmatprep.subr.mxu0 0.0
        %1413 = vmatpush2.msra.mxu0 0.0
        %1414 = vmatprep.subr.mxu0 0.0
        %1415 = vmatpush2.msra.mxu0 0.0
        %1416 = vmatprep.subr.mxu0 0.0
        %1417 = vmatpush2.msra.mxu0 0.0
        %1418 = vmatprep.subr.mxu0 0.0
        %1419 = vmatpush2.msra.mxu0 0.0
        %1420 = vmatprep.subr.mxu0 0.0
        %1421 = vmatpush2.msra.mxu0 0.0
        %1422 = vmatprep.subr.mxu0 0.0
        %1423 = vmatpush2.msra.mxu0 0.0
        %1424 = vmatprep.subr.mxu0 0.0
        %1425 = vmatpush2.msra.mxu0 0.0
        %1426 = vmatprep.subr.mxu0 0.0
        %1427 = vmatpush2.msra.mxu0 0.0
        %1428 = vmatprep.subr.mxu0 0.0
        %1429 = vmatpush2.msra.mxu0 0.0
        %1430 = vmatprep.mubr.f32.mxu0 0.0
        %1431 = vmatmul.mubr.f32.gmra.mxu0 %v1361
        %v1432 = vpop.f32.mrf.mxu0
        %v1433 = vadd.f32 0.0, %v1432
        %v1434 = vpop.f32.mrf.mxu0
        %1435 = vmatprep.mubr.f32.mxu0 0.0
        %1436 = vmatmul.mubr.f32.gmra.mxu0 %v1364
        %v1437 = vpop.f32.mrf.mxu0
        %v1438 = vadd.f32 0.0, %v1437
        %v1439 = vpop.f32.mrf.mxu0
        %1440 = vdwg.mxu0
        %v1441 = vld [vmem:[#allocation5] sm:$0xff]
        %v1442 = vld [vmem:[#allocation5 + $0x8] sm:$0xff]
        %v1443 = vld [vmem:[%s7] sm:$0x1]
        %v1445 = vlaneseq
        %v1446 = vshrl.u32 %v1445, 7
        %v1447 = vsub.s32 0, %v1446
        %v1448 = vrot.slane %v1443, %v1447
        %v1451 = vsel %vm715, %v1172, 0
        %v1454 = vsel %vm715, %v1177, 0
        %v1457 = vsel %vm715, %v1259, 0
        %v1460 = vsel %vm715, %v1264, 0
        %v1463 = vsel %vm715, %v1346, 0
        %v1466 = vsel %vm715, %v1351, 0
        %v1469 = vsel %vm715, %v1433, 0
        %v1472 = vsel %vm715, %v1438, 0
        %1474 = vmatprep.subr.mxu0 0.0
        %1475 = vmatpush1.msra.mxu0 0.0
        %1476 = vmatprep.subr.mxu0 0.0
        %1477 = vmatpush1.msra.mxu0 0.0
        %1478 = vmatprep.subr.mxu0 0.0
        %1479 = vmatpush1.msra.mxu0 0.0
        %1480 = vmatprep.subr.mxu0 0.0
        %1481 = vmatpush1.msra.mxu0 0.0
        %1482 = vmatprep.subr.mxu0 0.0
        %1483 = vmatpush1.msra.mxu0 0.0
        %1484 = vmatprep.subr.mxu0 0.0
        %1485 = vmatpush1.msra.mxu0 0.0
        %1486 = vmatprep.subr.mxu0 0.0
        %1487 = vmatpush1.msra.mxu0 0.0
        %1488 = vmatprep.subr.mxu0 0.0
        %1489 = vmatpush1.msra.mxu0 0.0
        %1490 = vmatprep.subr.mxu0 0.0
        %1491 = vmatpush1.msra.mxu0 0.0
        %1492 = vmatprep.subr.mxu0 0.0
        %1493 = vmatpush1.msra.mxu0 0.0
        %1494 = vmatprep.subr.mxu0 0.0
        %1495 = vmatpush1.msra.mxu0 0.0
        %1496 = vmatprep.subr.mxu0 0.0
        %1497 = vmatpush1.msra.mxu0 0.0
        %1498 = vmatprep.subr.mxu0 0.0
        %1499 = vmatpush1.msra.mxu0 0.0
        %1500 = vmatprep.subr.mxu0 0.0
        %1501 = vmatpush1.msra.mxu0 0.0
        %1502 = vmatprep.subr.mxu0 0.0
        %1503 = vmatpush1.msra.mxu0 %v1442
        %1504 = vmatprep.subr.mxu0 0.0
        %1505 = vmatpush1.msra.mxu0 %v1441
        %1506 = vmatprep.subr.mxu0 0.0
        %1507 = vmatpush2.msra.mxu0 0.0
        %1508 = vmatprep.subr.mxu0 0.0
        %1509 = vmatpush2.msra.mxu0 0.0
        %1510 = vmatprep.subr.mxu0 0.0
        %1511 = vmatpush2.msra.mxu0 0.0
        %1512 = vmatprep.subr.mxu0 0.0
        %1513 = vmatpush2.msra.mxu0 0.0
        %1514 = vmatprep.subr.mxu0 0.0
        %1515 = vmatpush2.msra.mxu0 0.0
        %1516 = vmatprep.subr.mxu0 0.0
        %1517 = vmatpush2.msra.mxu0 0.0
        %1518 = vmatprep.subr.mxu0 0.0
        %1519 = vmatpush2.msra.mxu0 0.0
        %1520 = vmatprep.subr.mxu0 0.0
        %1521 = vmatpush2.msra.mxu0 0.0
        %1522 = vmatprep.subr.mxu0 0.0
        %1523 = vmatpush2.msra.mxu0 0.0
        %1524 = vmatprep.subr.mxu0 0.0
        %1525 = vmatpush2.msra.mxu0 0.0
        %1526 = vmatprep.subr.mxu0 0.0
        %1527 = vmatpush2.msra.mxu0 0.0
        %1528 = vmatprep.subr.mxu0 0.0
        %1529 = vmatpush2.msra.mxu0 0.0
        %1530 = vmatprep.subr.mxu0 0.0
        %1531 = vmatpush2.msra.mxu0 0.0
        %1532 = vmatprep.subr.mxu0 0.0
        %1533 = vmatpush2.msra.mxu0 0.0
        %1534 = vmatprep.subr.mxu0 0.0
        %1535 = vmatpush2.msra.mxu0 0.0
        %1536 = vmatprep.subr.mxu0 0.0
        %1537 = vmatpush2.msra.mxu0 0.0
        %1538 = vmatprep.mubr.f32.mxu0 0.0
        %1539 = vmatmul.mubr.f32.gmra.mxu0 %v1451
        %v1540 = vpop.f32.mrf.mxu0
        %v1541 = vadd.f32 %v1448, %v1540
        %v1542 = vpop.f32.mrf.mxu0
        %1543 = vmatprep.mubr.f32.mxu0 0.0
        %1544 = vmatmul.mubr.f32.gmra.mxu0 %v1454
        %v1545 = vpop.f32.mrf.mxu0
        %v1546 = vadd.f32 %v1448, %v1545
        %v1547 = vpop.f32.mrf.mxu0
        %1548 = vmatprep.mubr.f32.mxu0 0.0
        %1549 = vmatmul.mubr.f32.gmra.mxu0 %v1457
        %v1550 = vpop.f32.mrf.mxu0
        %v1551 = vadd.f32 %v1448, %v1550
        %v1552 = vpop.f32.mrf.mxu0
        %1553 = vmatprep.mubr.f32.mxu0 0.0
        %1554 = vmatmul.mubr.f32.gmra.mxu0 %v1460
        %v1555 = vpop.f32.mrf.mxu0
        %v1556 = vadd.f32 %v1448, %v1555
        %v1557 = vpop.f32.mrf.mxu0
        %1558 = vmatprep.mubr.f32.mxu0 0.0
        %1559 = vmatmul.mubr.f32.gmra.mxu0 %v1463
        %v1560 = vpop.f32.mrf.mxu0
        %v1561 = vadd.f32 %v1448, %v1560
        %v1562 = vpop.f32.mrf.mxu0
        %1563 = vmatprep.mubr.f32.mxu0 0.0
        %1564 = vmatmul.mubr.f32.gmra.mxu0 %v1466
        %v1565 = vpop.f32.mrf.mxu0
        %v1566 = vadd.f32 %v1448, %v1565
        %v1567 = vpop.f32.mrf.mxu0
        %1568 = vmatprep.mubr.f32.mxu0 0.0
        %1569 = vmatmul.mubr.f32.gmra.mxu0 %v1469
        %v1570 = vpop.f32.mrf.mxu0
        %v1571 = vadd.f32 %v1448, %v1570
        %v1572 = vpop.f32.mrf.mxu0
        %1573 = vmatprep.mubr.f32.mxu0 0.0
        %1574 = vmatmul.mubr.f32.gmra.mxu0 %v1472
        %v1575 = vpop.f32.mrf.mxu0
        %v1576 = vadd.f32 %v1448, %v1575
        %v1577 = vpop.f32.mrf.mxu0
        %1578 = vdwg.mxu0
        %v1579 = vadd.f32 %v460, %v1541
        %v1580 = vadd.f32 %v461, %v1546
        %v1581 = vadd.f32 %v462, %v1551
        %v1582 = vadd.f32 %v463, %v1556
        %v1583 = vadd.f32 %v464, %v1561
        %v1584 = vadd.f32 %v465, %v1566
        %v1585 = vadd.f32 %v466, %v1571
        %v1586 = vadd.f32 %v467, %v1576
        %v1587 = vmul.f32 %v1579, %v1579
        %v1588 = vmul.f32 %v1580, %v1580
        %v1589 = vmul.f32 %v1581, %v1581
        %v1590 = vmul.f32 %v1582, %v1582
        %v1591 = vmul.f32 %v1583, %v1583
        %v1592 = vmul.f32 %v1584, %v1584
        %v1593 = vmul.f32 %v1585, %v1585
        %v1594 = vmul.f32 %v1586, %v1586
        %v1595 = vsel %vm476, %v1587, 0.0
        %1596 = vadd.xlane.f32.xlu0 %v1595
        %v1597 = vpop.xlane.xlu0 %1596
        %v1598 = vsel %vm476, %v1588, 0.0
        %1599 = vadd.xlane.f32.xlu0 %v1598
        %v1600 = vpop.xlane.xlu0 %1599
        %v1601 = vsel %vm476, %v1589, 0.0
        %1602 = vadd.xlane.f32.xlu0 %v1601
        %v1603 = vpop.xlane.xlu0 %1602
        %v1604 = vsel %vm476, %v1590, 0.0
        %1605 = vadd.xlane.f32.xlu0 %v1604
        %v1606 = vpop.xlane.xlu0 %1605
        %v1607 = vsel %vm476, %v1591, 0.0
        %1608 = vadd.xlane.f32.xlu0 %v1607
        %v1609 = vpop.xlane.xlu0 %1608
        %v1610 = vsel %vm476, %v1592, 0.0
        %1611 = vadd.xlane.f32.xlu0 %v1610
        %v1612 = vpop.xlane.xlu0 %1611
        %v1613 = vsel %vm476, %v1593, 0.0
        %1614 = vadd.xlane.f32.xlu0 %v1613
        %v1615 = vpop.xlane.xlu0 %1614
        %v1616 = vsel %vm476, %v1594, 0.0
        %1617 = vadd.xlane.f32.xlu0 %v1616
        %v1618 = vpop.xlane.xlu0 %1617
        %v1619 = vmul.f32 %v1597, %v501
        %v1620 = vmul.f32 %v1600, %v501
        %v1621 = vmul.f32 %v1603, %v501
        %v1622 = vmul.f32 %v1606, %v501
        %v1623 = vmul.f32 %v1609, %v501
        %v1624 = vmul.f32 %v1612, %v501
        %v1625 = vmul.f32 %v1615, %v501
        %v1626 = vmul.f32 %v1618, %v501
        %v1627 = vadd.f32 %v1619, 1.1920929e-07
        %v1628 = vadd.f32 %v1620, 1.1920929e-07
        %v1629 = vadd.f32 %v1621, 1.1920929e-07
        %v1630 = vadd.f32 %v1622, 1.1920929e-07
        %v1631 = vadd.f32 %v1623, 1.1920929e-07
        %v1632 = vadd.f32 %v1624, 1.1920929e-07
        %v1633 = vadd.f32 %v1625, 1.1920929e-07
        %v1634 = vadd.f32 %v1626, 1.1920929e-07
        %v1635 = vrsqrt.pop %v1627
        %v1636 = vrsqrt.pop %v1628
        %v1637 = vrsqrt.pop %v1629
        %v1638 = vrsqrt.pop %v1630
        %v1639 = vrsqrt.pop %v1631
        %v1640 = vrsqrt.pop %v1632
        %v1641 = vrsqrt.pop %v1633
        %v1642 = vrsqrt.pop %v1634
        %v1643 = vmul.f32 %v1579, %v1635
        %v1644 = vmul.f32 %v1580, %v1636
        %v1645 = vmul.f32 %v1581, %v1637
        %v1646 = vmul.f32 %v1582, %v1638
        %v1647 = vmul.f32 %v1583, %v1639
        %v1648 = vmul.f32 %v1584, %v1640
        %v1649 = vmul.f32 %v1585, %v1641
        %v1650 = vmul.f32 %v1586, %v1642
        %v1651 = vld [vmem:[#allocation2] sm:$0x1]
        %v1653 = vlaneseq
        %v1654 = vshrl.u32 %v1653, 7
        %v1655 = vsub.s32 0, %v1654
        %v1656 = vrot.slane %v1651, %v1655
        %v1658 = vmul.f32 %v1643, %v1656
        %v1659 = vmul.f32 %v1644, %v1656
        %v1660 = vmul.f32 %v1645, %v1656
        %v1661 = vmul.f32 %v1646, %v1656
        %v1662 = vmul.f32 %v1647, %v1656
        %v1663 = vmul.f32 %v1648, %v1656
        %v1664 = vmul.f32 %v1649, %v1656
        %v1665 = vmul.f32 %v1650, %v1656
        %v1666 = vld [vmem:[#allocation7] sm:$0xff]
        %v1667 = vld [vmem:[#allocation7 + $0x8] sm:$0xff]
        %v1668 = vld [vmem:[#allocation7 + $0x10] sm:$0xff]
        %v1669 = vld [vmem:[#allocation7 + $0x18] sm:$0xff]
        %v1670 = vld [vmem:[#allocation7 + $0x20] sm:$0xff]
        %v1671 = vld [vmem:[#allocation7 + $0x28] sm:$0xff]
        %v1672 = vld [vmem:[#allocation7 + $0x30] sm:$0xff]
        %v1673 = vld [vmem:[#allocation7 + $0x38] sm:$0xff]
        %v1674 = vld [vmem:[%s9] sm:$0x3]
        %v1676 = vlaneseq
        %v1677 = vshrl.u32 %v1676, 7
        %v1678 = vsub.s32 0, %v1677
        %v1679 = vrot.slane %v1674, %v1678
        %v1680 = vlaneseq
        %v1681 = vshrl.u32 %v1680, 7
        %v1682 = vsub.s32 1, %v1681
        %v1683 = vrot.slane %v1674, %v1682
        %v1687 = vsel %vm476, %v1658, 0
        %v1690 = vsel %vm476, %v1659, 0
        %v1693 = vsel %vm476, %v1660, 0
        %v1696 = vsel %vm476, %v1661, 0
        %v1699 = vsel %vm476, %v1662, 0
        %v1702 = vsel %vm476, %v1663, 0
        %v1705 = vsel %vm476, %v1664, 0
        %v1708 = vsel %vm476, %v1665, 0
        %1710 = vmatprep.subr.mxu0 0.0
        %1711 = vmatpush1.msra.mxu0 0.0
        %1712 = vmatprep.subr.mxu0 0.0
        %1713 = vmatpush1.msra.mxu0 0.0
        %1714 = vmatprep.subr.mxu0 0.0
        %1715 = vmatpush1.msra.mxu0 0.0
        %1716 = vmatprep.subr.mxu0 0.0
        %1717 = vmatpush1.msra.mxu0 0.0
        %1718 = vmatprep.subr.mxu0 0.0
        %1719 = vmatpush1.msra.mxu0 0.0
        %1720 = vmatprep.subr.mxu0 0.0
        %1721 = vmatpush1.msra.mxu0 0.0
        %1722 = vmatprep.subr.mxu0 0.0
        %1723 = vmatpush1.msra.mxu0 0.0
        %1724 = vmatprep.subr.mxu0 0.0
        %1725 = vmatpush1.msra.mxu0 0.0
        %1726 = vmatprep.subr.mxu0 0.0
        %1727 = vmatpush1.msra.mxu0 0.0
        %1728 = vmatprep.subr.mxu0 0.0
        %1729 = vmatpush1.msra.mxu0 0.0
        %1730 = vmatprep.subr.mxu0 0.0
        %1731 = vmatpush1.msra.mxu0 0.0
        %1732 = vmatprep.subr.mxu0 0.0
        %1733 = vmatpush1.msra.mxu0 0.0
        %1734 = vmatprep.subr.mxu0 %v1673
        %1735 = vmatpush1.msra.mxu0 %v1672
        %1736 = vmatprep.subr.mxu0 %v1671
        %1737 = vmatpush1.msra.mxu0 %v1670
        %1738 = vmatprep.subr.mxu0 %v1669
        %1739 = vmatpush1.msra.mxu0 %v1668
        %1740 = vmatprep.subr.mxu0 %v1667
        %1741 = vmatpush1.msra.mxu0 %v1666
        %1742 = vmatprep.subr.mxu0 0.0
        %1743 = vmatpush2.msra.mxu0 0.0
        %1744 = vmatprep.subr.mxu0 0.0
        %1745 = vmatpush2.msra.mxu0 0.0
        %1746 = vmatprep.subr.mxu0 0.0
        %1747 = vmatpush2.msra.mxu0 0.0
        %1748 = vmatprep.subr.mxu0 0.0
        %1749 = vmatpush2.msra.mxu0 0.0
        %1750 = vmatprep.subr.mxu0 0.0
        %1751 = vmatpush2.msra.mxu0 0.0
        %1752 = vmatprep.subr.mxu0 0.0
        %1753 = vmatpush2.msra.mxu0 0.0
        %1754 = vmatprep.subr.mxu0 0.0
        %1755 = vmatpush2.msra.mxu0 0.0
        %1756 = vmatprep.subr.mxu0 0.0
        %1757 = vmatpush2.msra.mxu0 0.0
        %1758 = vmatprep.subr.mxu0 0.0
        %1759 = vmatpush2.msra.mxu0 0.0
        %1760 = vmatprep.subr.mxu0 0.0
        %1761 = vmatpush2.msra.mxu0 0.0
        %1762 = vmatprep.subr.mxu0 0.0
        %1763 = vmatpush2.msra.mxu0 0.0
        %1764 = vmatprep.subr.mxu0 0.0
        %1765 = vmatpush2.msra.mxu0 0.0
        %1766 = vmatprep.subr.mxu0 0.0
        %1767 = vmatpush2.msra.mxu0 0.0
        %1768 = vmatprep.subr.mxu0 0.0
        %1769 = vmatpush2.msra.mxu0 0.0
        %1770 = vmatprep.subr.mxu0 0.0
        %1771 = vmatpush2.msra.mxu0 0.0
        %1772 = vmatprep.subr.mxu0 0.0
        %1773 = vmatpush2.msra.mxu0 0.0
        %1774 = vmatprep.mubr.f32.mxu0 0.0
        %1775 = vmatmul.mubr.f32.gmra.mxu0 %v1687
        %v1776 = vpop.f32.mrf.mxu0
        %v1777 = vadd.f32 %v1679, %v1776
        %v1778 = vpop.f32.mrf.mxu0
        %v1779 = vadd.f32 %v1683, %v1778
        %1780 = vmatprep.mubr.f32.mxu0 0.0
        %1781 = vmatmul.mubr.f32.gmra.mxu0 %v1690
        %v1782 = vpop.f32.mrf.mxu0
        %v1783 = vadd.f32 %v1679, %v1782
        %v1784 = vpop.f32.mrf.mxu0
        %v1785 = vadd.f32 %v1683, %v1784
        %1786 = vmatprep.mubr.f32.mxu0 0.0
        %1787 = vmatmul.mubr.f32.gmra.mxu0 %v1693
        %v1788 = vpop.f32.mrf.mxu0
        %v1789 = vadd.f32 %v1679, %v1788
        %v1790 = vpop.f32.mrf.mxu0
        %v1791 = vadd.f32 %v1683, %v1790
        %1792 = vmatprep.mubr.f32.mxu0 0.0
        %1793 = vmatmul.mubr.f32.gmra.mxu0 %v1696
        %v1794 = vpop.f32.mrf.mxu0
        %v1795 = vadd.f32 %v1679, %v1794
        %v1796 = vpop.f32.mrf.mxu0
        %v1797 = vadd.f32 %v1683, %v1796
        %1798 = vmatprep.mubr.f32.mxu0 0.0
        %1799 = vmatmul.mubr.f32.gmra.mxu0 %v1699
        %v1800 = vpop.f32.mrf.mxu0
        %v1801 = vadd.f32 %v1679, %v1800
        %v1802 = vpop.f32.mrf.mxu0
        %v1803 = vadd.f32 %v1683, %v1802
        %1804 = vmatprep.mubr.f32.mxu0 0.0
        %1805 = vmatmul.mubr.f32.gmra.mxu0 %v1702
        %v1806 = vpop.f32.mrf.mxu0
        %v1807 = vadd.f32 %v1679, %v1806
        %v1808 = vpop.f32.mrf.mxu0
        %v1809 = vadd.f32 %v1683, %v1808
        %1810 = vmatprep.mubr.f32.mxu0 0.0
        %1811 = vmatmul.mubr.f32.gmra.mxu0 %v1705
        %v1812 = vpop.f32.mrf.mxu0
        %v1813 = vadd.f32 %v1679, %v1812
        %v1814 = vpop.f32.mrf.mxu0
        %v1815 = vadd.f32 %v1683, %v1814
        %1816 = vmatprep.mubr.f32.mxu0 0.0
        %1817 = vmatmul.mubr.f32.gmra.mxu0 %v1708
        %v1818 = vpop.f32.mrf.mxu0
        %v1819 = vadd.f32 %v1679, %v1818
        %v1820 = vpop.f32.mrf.mxu0
        %v1821 = vadd.f32 %v1683, %v1820
        %1822 = vdwg.mxu0
        %v1823 = vxor.u32 %v1777, 2147483648
        %v1824 = vxor.u32 %v1783, 2147483648
        %v1825 = vxor.u32 %v1789, 2147483648
        %v1826 = vxor.u32 %v1795, 2147483648
        %v1827 = vxor.u32 %v1801, 2147483648
        %v1828 = vxor.u32 %v1807, 2147483648
        %v1829 = vxor.u32 %v1813, 2147483648
        %v1830 = vxor.u32 %v1819, 2147483648
        %v1831 = vmul.f32 %v1823, 1.442695
        %v1832 = vpow.pop %v1831
        %v1833 = vmul.f32 %v1824, 1.442695
        %v1834 = vpow.pop %v1833
        %v1835 = vmul.f32 %v1825, 1.442695
        %v1836 = vpow.pop %v1835
        %v1837 = vmul.f32 %v1826, 1.442695
        %v1838 = vpow.pop %v1837
        %v1839 = vmul.f32 %v1827, 1.442695
        %v1840 = vpow.pop %v1839
        %v1841 = vmul.f32 %v1828, 1.442695
        %v1842 = vpow.pop %v1841
        %v1843 = vmul.f32 %v1829, 1.442695
        %v1844 = vpow.pop %v1843
        %v1845 = vmul.f32 %v1830, 1.442695
        %v1846 = vpow.pop %v1845
        %v1847 = vadd.f32 %v1832, 1.0
        %v1848 = vadd.f32 %v1834, 1.0
        %v1849 = vadd.f32 %v1836, 1.0
        %v1850 = vadd.f32 %v1838, 1.0
        %v1851 = vadd.f32 %v1840, 1.0
        %v1852 = vadd.f32 %v1842, 1.0
        %v1853 = vadd.f32 %v1844, 1.0
        %v1854 = vadd.f32 %v1846, 1.0
        %v1855 = vrcp.pop %v1847
        %v1856 = vmul.f32 1.0, %v1855
        %v1857 = vrcp.pop %v1848
        %v1858 = vmul.f32 1.0, %v1857
        %v1859 = vrcp.pop %v1849
        %v1860 = vmul.f32 1.0, %v1859
        %v1861 = vrcp.pop %v1850
        %v1862 = vmul.f32 1.0, %v1861
        %v1863 = vrcp.pop %v1851
        %v1864 = vmul.f32 1.0, %v1863
        %v1865 = vrcp.pop %v1852
        %v1866 = vmul.f32 1.0, %v1865
        %v1867 = vrcp.pop %v1853
        %v1868 = vmul.f32 1.0, %v1867
        %v1869 = vrcp.pop %v1854
        %v1870 = vmul.f32 1.0, %v1869
        %v1871 = vmul.f32 %v1777, %v1856
        %v1872 = vmul.f32 %v1783, %v1858
        %v1873 = vmul.f32 %v1789, %v1860
        %v1874 = vmul.f32 %v1795, %v1862
        %v1875 = vmul.f32 %v1801, %v1864
        %v1876 = vmul.f32 %v1807, %v1866
        %v1877 = vmul.f32 %v1813, %v1868
        %v1878 = vmul.f32 %v1819, %v1870
        %v1879 = vmul.f32 %v1871, %v1779
        %v1880 = vmul.f32 %v1872, %v1785
        %v1881 = vmul.f32 %v1873, %v1791
        %v1882 = vmul.f32 %v1874, %v1797
        %v1883 = vmul.f32 %v1875, %v1803
        %v1884 = vmul.f32 %v1876, %v1809
        %v1885 = vmul.f32 %v1877, %v1815
        %v1886 = vmul.f32 %v1878, %v1821
        %v1887 = vld [vmem:[%s10] sm:$0xff]
        %v1888 = vld [vmem:[%s10 + $0x8] sm:$0xff]
        %v1889 = vld [vmem:[%s10 + $0x10] sm:$0xff]
        %v1890 = vld [vmem:[%s10 + $0x18] sm:$0xff]
        %v1891 = vld [vmem:[%s10 + $0x20] sm:$0xff]
        %v1892 = vld [vmem:[%s10 + $0x28] sm:$0xff]
        %v1893 = vld [vmem:[%s10 + $0x30] sm:$0xff]
        %v1894 = vld [vmem:[%s10 + $0x38] sm:$0xff]
        %v1895 = vld [vmem:[%s10 + $0x40] sm:$0xff]
        %v1896 = vld [vmem:[%s10 + $0x48] sm:$0xff]
        %v1897 = vld [vmem:[%s10 + $0x50] sm:$0xff]
        %v1898 = vld [vmem:[%s10 + $0x58] sm:$0xff]
        %v1899 = vld [vmem:[%s10 + $0x60] sm:$0xff]
        %v1900 = vld [vmem:[%s10 + $0x68] sm:$0xff]
        %v1901 = vld [vmem:[%s10 + $0x70] sm:$0xff]
        %v1902 = vld [vmem:[%s10 + $0x78] sm:$0xff]
        %v1903 = vld [vmem:[%s11] sm:$0x1]
        %v1905 = vlaneseq
        %v1906 = vshrl.u32 %v1905, 7
        %v1907 = vsub.s32 0, %v1906
        %v1908 = vrot.slane %v1903, %v1907
        %1910 = vmatprep.subr.mxu0 0.0
        %1911 = vmatpush1.msra.mxu0 %v1902
        %1912 = vmatprep.subr.mxu0 0.0
        %1913 = vmatpush1.msra.mxu0 %v1901
        %1914 = vmatprep.subr.mxu0 0.0
        %1915 = vmatpush1.msra.mxu0 %v1900
        %1916 = vmatprep.subr.mxu0 0.0
        %1917 = vmatpush1.msra.mxu0 %v1899
        %1918 = vmatprep.subr.mxu0 0.0
        %1919 = vmatpush1.msra.mxu0 %v1898
        %1920 = vmatprep.subr.mxu0 0.0
        %1921 = vmatpush1.msra.mxu0 %v1897
        %1922 = vmatprep.subr.mxu0 0.0
        %1923 = vmatpush1.msra.mxu0 %v1896
        %1924 = vmatprep.subr.mxu0 0.0
        %1925 = vmatpush1.msra.mxu0 %v1895
        %1926 = vmatprep.subr.mxu0 0.0
        %1927 = vmatpush1.msra.mxu0 %v1894
        %1928 = vmatprep.subr.mxu0 0.0
        %1929 = vmatpush1.msra.mxu0 %v1893
        %1930 = vmatprep.subr.mxu0 0.0
        %1931 = vmatpush1.msra.mxu0 %v1892
        %1932 = vmatprep.subr.mxu0 0.0
        %1933 = vmatpush1.msra.mxu0 %v1891
        %1934 = vmatprep.subr.mxu0 0.0
        %1935 = vmatpush1.msra.mxu0 %v1890
        %1936 = vmatprep.subr.mxu0 0.0
        %1937 = vmatpush1.msra.mxu0 %v1889
        %1938 = vmatprep.subr.mxu0 0.0
        %1939 = vmatpush1.msra.mxu0 %v1888
        %1940 = vmatprep.subr.mxu0 0.0
        %1941 = vmatpush1.msra.mxu0 %v1887
        %1942 = vmatprep.subr.mxu0 0.0
        %1943 = vmatpush2.msra.mxu0 0.0
        %1944 = vmatprep.subr.mxu0 0.0
        %1945 = vmatpush2.msra.mxu0 0.0
        %1946 = vmatprep.subr.mxu0 0.0
        %1947 = vmatpush2.msra.mxu0 0.0
        %1948 = vmatprep.subr.mxu0 0.0
        %1949 = vmatpush2.msra.mxu0 0.0
        %1950 = vmatprep.subr.mxu0 0.0
        %1951 = vmatpush2.msra.mxu0 0.0
        %1952 = vmatprep.subr.mxu0 0.0
        %1953 = vmatpush2.msra.mxu0 0.0
        %1954 = vmatprep.subr.mxu0 0.0
        %1955 = vmatpush2.msra.mxu0 0.0
        %1956 = vmatprep.subr.mxu0 0.0
        %1957 = vmatpush2.msra.mxu0 0.0
        %1958 = vmatprep.subr.mxu0 0.0
        %1959 = vmatpush2.msra.mxu0 0.0
        %1960 = vmatprep.subr.mxu0 0.0
        %1961 = vmatpush2.msra.mxu0 0.0
        %1962 = vmatprep.subr.mxu0 0.0
        %1963 = vmatpush2.msra.mxu0 0.0
        %1964 = vmatprep.subr.mxu0 0.0
        %1965 = vmatpush2.msra.mxu0 0.0
        %1966 = vmatprep.subr.mxu0 0.0
        %1967 = vmatpush2.msra.mxu0 0.0
        %1968 = vmatprep.subr.mxu0 0.0
        %1969 = vmatpush2.msra.mxu0 0.0
        %1970 = vmatprep.subr.mxu0 0.0
        %1971 = vmatpush2.msra.mxu0 0.0
        %1972 = vmatprep.subr.mxu0 0.0
        %1973 = vmatpush2.msra.mxu0 0.0
        %1974 = vmatprep.mubr.f32.mxu0 0.0
        %1975 = vmatmul.mubr.f32.gmra.mxu0 %v1879
        %v1976 = vpop.f32.mrf.mxu0
        %v1977 = vadd.f32 %v1908, %v1976
        %v1978 = vpop.f32.mrf.mxu0
        %1979 = vmatprep.mubr.f32.mxu0 0.0
        %1980 = vmatmul.mubr.f32.gmra.mxu0 %v1880
        %v1981 = vpop.f32.mrf.mxu0
        %v1982 = vadd.f32 %v1908, %v1981
        %v1983 = vpop.f32.mrf.mxu0
        %1984 = vmatprep.mubr.f32.mxu0 0.0
        %1985 = vmatmul.mubr.f32.gmra.mxu0 %v1881
        %v1986 = vpop.f32.mrf.mxu0
        %v1987 = vadd.f32 %v1908, %v1986
        %v1988 = vpop.f32.mrf.mxu0
        %1989 = vmatprep.mubr.f32.mxu0 0.0
        %1990 = vmatmul.mubr.f32.gmra.mxu0 %v1882
        %v1991 = vpop.f32.mrf.mxu0
        %v1992 = vadd.f32 %v1908, %v1991
        %v1993 = vpop.f32.mrf.mxu0
        %1994 = vmatprep.mubr.f32.mxu0 0.0
        %1995 = vmatmul.mubr.f32.gmra.mxu0 %v1883
        %v1996 = vpop.f32.mrf.mxu0
        %v1997 = vadd.f32 %v1908, %v1996
        %v1998 = vpop.f32.mrf.mxu0
        %1999 = vmatprep.mubr.f32.mxu0 0.0
        %2000 = vmatmul.mubr.f32.gmra.mxu0 %v1884
        %v2001 = vpop.f32.mrf.mxu0
        %v2002 = vadd.f32 %v1908, %v2001
        %v2003 = vpop.f32.mrf.mxu0
        %2004 = vmatprep.mubr.f32.mxu0 0.0
        %2005 = vmatmul.mubr.f32.gmra.mxu0 %v1885
        %v2006 = vpop.f32.mrf.mxu0
        %v2007 = vadd.f32 %v1908, %v2006
        %v2008 = vpop.f32.mrf.mxu0
        %2009 = vmatprep.mubr.f32.mxu0 0.0
        %2010 = vmatmul.mubr.f32.gmra.mxu0 %v1886
        %v2011 = vpop.f32.mrf.mxu0
        %v2012 = vadd.f32 %v1908, %v2011
        %v2013 = vpop.f32.mrf.mxu0
        %2014 = vdwg.mxu0
        %v2015 = vadd.f32 %v1579, %v1977
        %v2016 = vadd.f32 %v1580, %v1982
        %v2017 = vadd.f32 %v1581, %v1987
        %v2018 = vadd.f32 %v1582, %v1992
        %v2019 = vadd.f32 %v1583, %v1997
        %v2020 = vadd.f32 %v1584, %v2002
        %v2021 = vadd.f32 %v1585, %v2007
        %v2022 = vadd.f32 %v1586, %v2012
        %2023 = vst.msk [vmem:[%s451] sm:$0xff] %vm476, %v2015
        %2024 = vst.msk [vmem:[%s451 + $0x8] sm:$0xff] %vm476, %v2016
        %2025 = vst.msk [vmem:[%s451 + $0x10] sm:$0xff] %vm476, %v2017
        %2026 = vst.msk [vmem:[%s451 + $0x18] sm:$0xff] %vm476, %v2018
        %2027 = vst.msk [vmem:[%s451 + $0x20] sm:$0xff] %vm476, %v2019
        %2028 = vst.msk [vmem:[%s451 + $0x28] sm:$0xff] %vm476, %v2020
        %2029 = vst.msk [vmem:[%s451 + $0x30] sm:$0xff] %vm476, %v2021
        %2030 = vst.msk [vmem:[%s451 + $0x38] sm:$0xff] %vm476, %v2022
        %s2031 = sand.u32 %s293, 1
        %s2032 = scalar_lea.sflag [#allocation4], %s2031
        %s2033 = sand.u32 %s293, 1
        %s2034 = smul.addr %s2033, 64
        %s2035 = scalar_lea.vmem [#allocation8], %s2034
        // Predicated region
        $region81: #{tpu_custom_call.1} parent=67 // pred_check
          %p2036 = pneg %p303
        $region82: #{tpu_custom_call.1} parent=67 // pred_check_branch
          %2038 = sbr.rel (%p2036) target = $region84
        $region83: #{tpu_custom_call.1} parent=67 // pred_region
          %s2039 = smul.u32 4, %s28
          %s2041 = ssub.s32 1024, 1024
          %2042 = vsyncadd %s2032, %s2041
          %s2043 = smul.addr %s2039, 2
          %s2044 = smul.addr %s2043, 128
          %s2045 = scalar_lea.hbm %s12, %s2044
          %s2046 = sshll.u32 %s2035, 4
          %s2047 = int_to_ptr.vmem [resolvable:$true] %s2046
          %2052 = dma.vmem_to_hbm [thread:$0]  %s2047, 1024, %s2045, %s2032, 128, 128, 8
        $region84: #{tpu_custom_call.1} parent=67 // pred_fallthru
          _
      $region68: #{tpu_custom_call.1} parent=5 // pred_fallthru
        _
      %p2053 = scmp.le.s32.totalorder 2, %s23
      // Predicated region
      $region85: #{tpu_custom_call.1} parent=5 // pred_check
        %p2054 = pneg %p2053
      $region86: #{tpu_custom_call.1} parent=5 // pred_check_branch
        %2056 = sbr.rel (%p2054) target = $region88
      $region87: #{tpu_custom_call.1} parent=5 // pred_region
        %s2057 = ssub.s32 %s23, 2
        // Predicated region
        $region89: #{tpu_custom_call.1} parent=87 // pred_check
          %p2058 = pneg %p309
        $region90: #{tpu_custom_call.1} parent=87 // pred_check_branch
          %2060 = sbr.rel (%p2058) target = $region92
        $region91: #{tpu_custom_call.1} parent=87 // pred_region
          %s2061 = sand.u32 %s294, 1
          %s2062 = scalar_lea.sflag [#allocation4], %s2061
          %s2063 = sand.u32 %s294, 1
          %s2064 = smul.addr %s2063, 64
          %s2065 = scalar_lea.vmem [#allocation8], %s2064
          %2066 = dma.done %s2062, 1024
        $region92: #{tpu_custom_call.1} parent=87 // pred_fallthru
          _
      $region88: #{tpu_custom_call.1} parent=5 // pred_fallthru
        _
    $region6: #{tpu_custom_call.1} parent=1 // loop_footer
      %s27 = sadd.s32 1, %s23
    $region7: #{tpu_custom_call.1} parent=1 // loop_footer_branch
      %22 = sbr.rel target = $region3
    $region8: #{tpu_custom_call.1} parent=1 // loop_exit
      _
    %2067 = vsyncpa [#allocation3], 1
    %s2068 = scalar_lea.sflag [#allocation3], 1
    %2069 = vsyncpa %s2068, 1
    %2070 = vsyncpa [#allocation6], 1
    %2071 = vsyncpa [#allocation4], 1
    %s2072 = scalar_lea.sflag [#allocation4], 1
    %2073 = vsyncpa %s2072, 1

</llo_original>
